<compile_context>
chip_gen: v5e
topology: v5e:2x2
jax: 0.10.0
libtpu: 0.0.40
codegen_flags: <defaults>
</compile_context>

<pallas_src>
import math
import functools

import jax
import jax.numpy as jnp
from jax import lax
from jax.experimental import pallas as pl
from jax.experimental.pallas import tpu as pltpu


# ----------------------------------------------------------------------------
# Fused decoder kernel: one batch element per grid step.
# ----------------------------------------------------------------------------
def decoder_kernel(tvec_ref, bb_ref, ev_ref, wbb_ref, wev_ref, bin_ref,
                   wc_ref, bc_ref, wqkv_ref, bqkv_ref, w1_ref, b1_ref,
                   w2_ref, b2_ref, wout_ref, bout_ref, o_ref,
                   *, L, C, K, num_layers):
    # conv_in on NCL inputs: contract the channel axis of the (C_in, L) blocks directly
    # (x_nlc @ W  ==  dot_general(x_ncl, W, contract axis 0 with axis 0)) -> (L, C)
    dn = (((0,), (0,)), ((), ()))
    x = lax.dot_general(bb_ref[0], wbb_ref[...], dn, preferred_element_type=jnp.float32)
    x = x + lax.dot_general(ev_ref[0], wev_ref[...], dn, preferred_element_type=jnp.float32)
    x = x + bin_ref[...] + tvec_ref[...]                       # broadcast time vector add

    inv_sqrt_d = 1.0 / math.sqrt(C)
    log_valid = math.log(1.0 + 1e-6)                           # matches torch.log(mask + 1e-6)
    log_invalid = math.log(1e-6)

    # Statically unrolled layer loop (num_layers is small); x stays on-chip throughout.
    for i in range(num_layers):
        dil = 2 ** i
        pad = (K // 2) * dil
        zpad = jnp.zeros((pad, C), jnp.float32)
        xpad = jnp.concatenate([zpad, x, zpad], axis=0)        # in-VMEM halo (L + 2*pad, C)

        # ---- conv_block: dilated Conv1d as a single im2col matmul ----
        taps = jnp.concatenate([xpad[j * dil:j * dil + L, :] for j in range(K)], axis=1)
        out1 = jnp.dot(taps, wc_ref[i], preferred_element_type=jnp.float32) + bc_ref[i]

        # ---- attention: fused q/k/v projection, k/v zero-padded after the projection ----
        qkv = jnp.dot(x, wqkv_ref[i], preferred_element_type=jnp.float32) + bqkv_ref[i]
        xq = qkv[:, :C]
        xk = jnp.concatenate([zpad, qkv[:, C:2 * C], zpad], axis=0)
        xv = jnp.concatenate([zpad, qkv[:, 2 * C:], zpad], axis=0)

        # banded logits stacked into a single (L, K) array
        logits = jnp.concatenate(
            [jnp.sum(xq * xk[j * dil:j * dil + L, :], axis=-1, keepdims=True)
             for j in range(K)], axis=1) * inv_sqrt_d
        l_idx = lax.broadcasted_iota(jnp.int32, (L, K), 0)
        k_idx = lax.broadcasted_iota(jnp.int32, (L, K), 1)
        pos = l_idx + k_idx * dil                              # key index in padded coords
        valid = (pos >= pad) & (pos < L + pad)
        logits = logits + jnp.where(valid, log_valid, log_invalid)

        m = jnp.max(logits, axis=-1, keepdims=True)
        p = jnp.exp(logits - m)
        den = jnp.sum(p, axis=-1, keepdims=True)               # denominator keeps masked terms
        att = (p / den) * valid.astype(jnp.float32)            # ... numerator is re-masked

        r = jnp.zeros((L, C), jnp.float32)
        for j in range(K):
            r = r + att[:, j:j + 1] * xv[j * dil:j * dil + L, :]

        # ---- InstanceNorm over L (single pass) + 1x1 FFN (ReLU) + residual ----
        h = out1 + r
        mean = jnp.mean(h, axis=0, keepdims=True)
        meansq = jnp.mean(h * h, axis=0, keepdims=True)
        var = meansq - mean * mean
        hn = (h - mean) * lax.rsqrt(var + 1e-5)
        f = jnp.maximum(jnp.dot(hn, w1_ref[i], preferred_element_type=jnp.float32) + b1_ref[i], 0.0)
        f = jnp.dot(f, w2_ref[i], preferred_element_type=jnp.float32) + b2_ref[i]
        x = x + f

    # ---- conv_out, written lane-dense as (num_classes, L) ----
    out = jnp.dot(x, wout_ref[...], preferred_element_type=jnp.float32) + bout_ref[...]
    o_ref[0] = jnp.transpose(out).astype(o_ref.dtype)


# ----------------------------------------------------------------------------
# Glue: sinusoidal timestep embedding (tiny; plain JAX).
# ----------------------------------------------------------------------------
def get_timestep_embedding(timesteps, embedding_dim):
    half_dim = embedding_dim // 2
    emb = math.log(10000) / (half_dim - 1)
    emb = jnp.exp(jnp.arange(half_dim, dtype=jnp.float32) * -emb)
    emb = timesteps.astype(jnp.float32)[:, None] * emb[None, :]
    emb = jnp.concatenate([jnp.sin(emb), jnp.cos(emb)], axis=1)
    if embedding_dim % 2 == 1:
        emb = jnp.pad(emb, ((0, 0), (0, 1)))
    return emb


def _swish(x):
    return x * jax.nn.sigmoid(x)


# ----------------------------------------------------------------------------
# ASDiffusionModel.forward  (cond_types == ['full'])
#   == DecoderModelNoCross.forward(backbone_feats, t, event_diffused, ant_range)
# Inputs / output are NCL, matching the PyTorch module.
# ----------------------------------------------------------------------------
def as_diffusion_forward(params, backbone_feats, t, event_diffused, ant_range,
                         *, time_emb_dim, kernel_size):
    del ant_range  # ant_emb is zeroed in the reference -> contributes nothing
    D = time_emb_dim
    N, C_bb, L = backbone_feats.shape
    n_cls = event_diffused.shape[1]
    C = params['win'].shape[1]
    num_layers = len(params['layers'])
    K = kernel_size

    # --- time embedding path: 3 tiny Linears on a (1, D) vector -> plain jnp ---
    temb = get_timestep_embedding(t, D)                         # (1, D) (batch-1 timestep)
    assert temb.shape[0] == 1, "reference broadcasts a batch-1 time embedding"
    e = _swish(temb @ params['wt0'] + params['bt0'])            # time_in[0] + swish
    e = _swish(e @ params['wt1'] + params['bt1'])               # time_in[1] + module swish
    tvec = e @ params['wtp'] + params['btp']                    # time_proj -> (1, C)

    # --- pack per-layer weights into stacked, fused layouts (tiny, one-time work) ---
    layers = params['layers']
    wc = jnp.stack([lp['wc'].reshape(K * C, C) for lp in layers])          # (nl, K*C, C)
    bc = jnp.stack([lp['bc'] for lp in layers])                            # (nl, 1, C)
    wqkv = jnp.stack([jnp.concatenate([lp['wq'], lp['wk'], lp['wv']], axis=1)
                      for lp in layers])                                   # (nl, C, 3C)
    bqkv = jnp.stack([jnp.concatenate([lp['bq'], lp['bk'], lp['bv']], axis=1)
                      for lp in layers])                                   # (nl, 1, 3C)
    w1 = jnp.stack([lp['w1'] for lp in layers])
    b1 = jnp.stack([lp['b1'] for lp in layers])
    w2 = jnp.stack([lp['w2'] for lp in layers])
    b2 = jnp.stack([lp['b2'] for lp in layers])

    # conv_in weight split: rows for backbone channels vs event channels
    w_bb = params['win'][:C_bb]                                            # (C_bb, C)
    w_ev = params['win'][C_bb:]                                            # (n_cls, C)

    kern = functools.partial(decoder_kernel, L=L, C=C, K=K, num_layers=num_layers)
    full2 = lambda n: (0, 0)
    full3 = lambda n: (0, 0, 0)

    # TODO(synk): for very long sequences, tile L with a `pad`-sized halo and a two-pass
    # InstanceNorm instead of holding the whole (L, C) activation per grid step.
    out = pl.pallas_call(
        kern,
        out_shape=jax.ShapeDtypeStruct((N, n_cls, L), jnp.float32),
        grid=(N,),
        in_specs=[
            pl.BlockSpec((1, C), full2),                                   # tvec
            pl.BlockSpec((1, C_bb, L), lambda n: (n, 0, 0)),               # backbone (NCL)
            pl.BlockSpec((1, n_cls, L), lambda n: (n, 0, 0)),              # event (NCL)
            pl.BlockSpec((C_bb, C), full2),                                # w_bb
            pl.BlockSpec((n_cls, C), full2),                               # w_ev
            pl.BlockSpec((1, C), full2),                                   # b_in
            pl.BlockSpec((num_layers, K * C, C), full3),                   # wc (im2col)
            pl.BlockSpec((num_layers, 1, C), full3),                       # bc
            pl.BlockSpec((num_layers, C, 3 * C), full3),                   # wqkv
            pl.BlockSpec((num_layers, 1, 3 * C), full3),                   # bqkv
            pl.BlockSpec((num_layers, C, C), full3),                       # w1
            pl.BlockSpec((num_layers, 1, C), full3),                       # b1
            pl.BlockSpec((num_layers, C, C), full3),                       # w2
            pl.BlockSpec((num_layers, 1, C), full3),                       # b2
            pl.BlockSpec((C, n_cls), full2),                               # wout
            pl.BlockSpec((1, n_cls), full2),                               # bout
        ],
        out_specs=pl.BlockSpec((1, n_cls, L), lambda n: (n, 0, 0)),
        compiler_params=pltpu.CompilerParams(dimension_semantics=("parallel",)),
    )(tvec, backbone_feats, event_diffused.astype(jnp.float32),
      w_bb, w_ev, params['bin'], wc, bc, wqkv, bqkv, w1, b1, w2, b2,
      params['wout'], params['bout'])
    return out                                                             # (N, num_classes, L)


if __name__ == "__main__":
    # small config consistent with the module
    N, L = 2, 16
    num_classes = 8
    num_f_maps = 32
    time_emb_dim = 32
    num_layers = 2
    kernel_size = 3
    # decoder input dim implied by encoder feature_layer_indices=[0, 1] and num_f_maps=32
    dec_input_dim = 2 * num_f_maps                                         # 64

    keys = iter(jax.random.split(jax.random.PRNGKey(0), 64))

    def w(shape, scale=0.1):
        return scale * jax.random.normal(next(keys), shape, dtype=jnp.float32)

    params = {
        'wt0': w((time_emb_dim, time_emb_dim)), 'bt0': w((1, time_emb_dim)),
        'wt1': w((time_emb_dim, time_emb_dim)), 'bt1': w((1, time_emb_dim)),
        'wtp': w((time_emb_dim, num_f_maps)),   'btp': w((1, num_f_maps)),
        'win': w((dec_input_dim + num_classes, num_f_maps)), 'bin': w((1, num_f_maps)),
        'wout': w((num_f_maps, num_classes)),   'bout': w((1, num_classes)),
        'layers': [],
    }
    for _ in range(num_layers):
        params['layers'].append({
            'wc': w((kernel_size, num_f_maps, num_f_maps)), 'bc': w((1, num_f_maps)),
            'wq': w((num_f_maps, num_f_maps)), 'bq': w((1, num_f_maps)),
            'wk': w((num_f_maps, num_f_maps)), 'bk': w((1, num_f_maps)),
            'wv': w((num_f_maps, num_f_maps)), 'bv': w((1, num_f_maps)),
            'w1': w((num_f_maps, num_f_maps)), 'b1': w((1, num_f_maps)),
            'w2': w((num_f_maps, num_f_maps)), 'b2': w((1, num_f_maps)),
        })

    dkeys = jax.random.split(jax.random.PRNGKey(0), 3)
    backbone_feats = jax.random.normal(dkeys[0], (N, dec_input_dim, L), dtype=jnp.float32)
    event_diffused = jax.random.uniform(dkeys[1], (N, num_classes, L), dtype=jnp.float32)
    t = jnp.array([7], dtype=jnp.int32)            # diffusion timestep (batch 1, as in prepare_targets)
    ant_range = jnp.array([3], dtype=jnp.int32)

    out = as_diffusion_forward(params, backbone_feats, t, event_diffused, ant_range,
                               time_emb_dim=time_emb_dim, kernel_size=kernel_size)
    out = jax.block_until_ready(out)
    assert out.shape == (N, num_classes, L)
    assert bool(jnp.all(jnp.isfinite(out)))
    print("KERNEL_OK")
</pallas_src>

<mosaic_0001>
module attributes {stable_mosaic.version = 11 : i64} {
  func.func @decoder_kernel(%arg0: i32, %arg1: memref<1x32xf32, #tpu.memory_space<vmem>>, %arg2: memref<1x64x16xf32, #tpu.memory_space<vmem>>, %arg3: memref<1x8x16xf32, #tpu.memory_space<vmem>>, %arg4: memref<64x32xf32, #tpu.memory_space<vmem>>, %arg5: memref<8x32xf32, #tpu.memory_space<vmem>>, %arg6: memref<1x32xf32, #tpu.memory_space<vmem>>, %arg7: memref<2x96x32xf32, #tpu.memory_space<vmem>>, %arg8: memref<2x1x32xf32, #tpu.memory_space<vmem>>, %arg9: memref<2x32x96xf32, #tpu.memory_space<vmem>>, %arg10: memref<2x1x96xf32, #tpu.memory_space<vmem>>, %arg11: memref<2x32x32xf32, #tpu.memory_space<vmem>>, %arg12: memref<2x1x32xf32, #tpu.memory_space<vmem>>, %arg13: memref<2x32x32xf32, #tpu.memory_space<vmem>>, %arg14: memref<2x1x32xf32, #tpu.memory_space<vmem>>, %arg15: memref<32x8xf32, #tpu.memory_space<vmem>>, %arg16: memref<1x8xf32, #tpu.memory_space<vmem>>, %arg17: memref<1x8x16xf32, #tpu.memory_space<vmem>>) attributes {dimension_semantics = [#tpu.dimension_semantics<parallel>], iteration_bounds = array<i64: 2>, scalar_prefetch = 0 : i64, scratch_operands = 0 : i64, tpu.core_type = #tpu.core_type<tc>, window_params = [{pipeline_mode = #tpu.pipeline_mode<synchronous>, transform_indices = @transform_0, window_bounds = array<i64: 1, 32>}, {transform_indices = @transform_1, window_bounds = array<i64: 1, 64, 16>}, {transform_indices = @transform_2, window_bounds = array<i64: 1, 8, 16>}, {pipeline_mode = #tpu.pipeline_mode<synchronous>, transform_indices = @transform_3, window_bounds = array<i64: 64, 32>}, {pipeline_mode = #tpu.pipeline_mode<synchronous>, transform_indices = @transform_4, window_bounds = array<i64: 8, 32>}, {pipeline_mode = #tpu.pipeline_mode<synchronous>, transform_indices = @transform_5, window_bounds = array<i64: 1, 32>}, {pipeline_mode = #tpu.pipeline_mode<synchronous>, transform_indices = @transform_6, window_bounds = array<i64: 2, 96, 32>}, {pipeline_mode = #tpu.pipeline_mode<synchronous>, transform_indices = @transform_7, window_bounds = array<i64: 2, 1, 32>}, {pipeline_mode = #tpu.pipeline_mode<synchronous>, transform_indices = @transform_8, window_bounds = array<i64: 2, 32, 96>}, {pipeline_mode = #tpu.pipeline_mode<synchronous>, transform_indices = @transform_9, window_bounds = array<i64: 2, 1, 96>}, {pipeline_mode = #tpu.pipeline_mode<synchronous>, transform_indices = @transform_10, window_bounds = array<i64: 2, 32, 32>}, {pipeline_mode = #tpu.pipeline_mode<synchronous>, transform_indices = @transform_11, window_bounds = array<i64: 2, 1, 32>}, {pipeline_mode = #tpu.pipeline_mode<synchronous>, transform_indices = @transform_12, window_bounds = array<i64: 2, 32, 32>}, {pipeline_mode = #tpu.pipeline_mode<synchronous>, transform_indices = @transform_13, window_bounds = array<i64: 2, 1, 32>}, {pipeline_mode = #tpu.pipeline_mode<synchronous>, transform_indices = @transform_14, window_bounds = array<i64: 32, 8>}, {pipeline_mode = #tpu.pipeline_mode<synchronous>, transform_indices = @transform_15, window_bounds = array<i64: 1, 8>}, {transform_indices = @transform_16, window_bounds = array<i64: 1, 8, 16>}]} {
    %c0 = arith.constant 0 : index
    %c0_0 = arith.constant 0 : index
    %c0_1 = arith.constant 0 : index
    %0 = vector.load %arg2[%c0, %c0_0, %c0_1] : memref<1x64x16xf32, #tpu.memory_space<vmem>>, vector<1x64x16xf32>
    %1 = vector.shape_cast %0 : vector<1x64x16xf32> to vector<64x16xf32>
    %c0_2 = arith.constant 0 : index
    %c0_3 = arith.constant 0 : index
    %2 = vector.load %arg4[%c0_2, %c0_3] : memref<64x32xf32, #tpu.memory_space<vmem>>, vector<64x32xf32>
    %cst = arith.constant dense<0.000000e+00> : vector<16x32xf32>
    %3 = tpu.matmul %1, %2, %cst {dimension_numbers = #tpu.dot_dimension_numbers<[0], [0], [1], [1], [0, 1, 1, 1], [], []>} : vector<64x16xf32>, vector<64x32xf32>, vector<16x32xf32> -> vector<16x32xf32>
    %c0_4 = arith.constant 0 : index
    %c0_5 = arith.constant 0 : index
    %c0_6 = arith.constant 0 : index
    %4 = vector.load %arg3[%c0_4, %c0_5, %c0_6] : memref<1x8x16xf32, #tpu.memory_space<vmem>>, vector<1x8x16xf32>
    %5 = vector.shape_cast %4 : vector<1x8x16xf32> to vector<8x16xf32>
    %c0_7 = arith.constant 0 : index
    %c0_8 = arith.constant 0 : index
    %6 = vector.load %arg5[%c0_7, %c0_8] : memref<8x32xf32, #tpu.memory_space<vmem>>, vector<8x32xf32>
    %cst_9 = arith.constant dense<0.000000e+00> : vector<16x32xf32>
    %7 = tpu.matmul %5, %6, %cst_9 {dimension_numbers = #tpu.dot_dimension_numbers<[0], [0], [1], [1], [0, 1, 1, 1], [], []>} : vector<8x16xf32>, vector<8x32xf32>, vector<16x32xf32> -> vector<16x32xf32>
    %8 = arith.addf %3, %7 : vector<16x32xf32>
    %c0_10 = arith.constant 0 : index
    %c0_11 = arith.constant 0 : index
    %9 = vector.load %arg6[%c0_10, %c0_11] : memref<1x32xf32, #tpu.memory_space<vmem>>, vector<1x32xf32>
    %10 = vector.broadcast %9 : vector<1x32xf32> to vector<16x32xf32>
    %11 = arith.addf %8, %10 : vector<16x32xf32>
    %c0_12 = arith.constant 0 : index
    %c0_13 = arith.constant 0 : index
    %12 = vector.load %arg1[%c0_12, %c0_13] : memref<1x32xf32, #tpu.memory_space<vmem>>, vector<1x32xf32>
    %13 = vector.broadcast %12 : vector<1x32xf32> to vector<16x32xf32>
    %14 = arith.addf %11, %13 : vector<16x32xf32>
    %cst_14 = arith.constant 0.000000e+00 : f32
    %15 = vector.broadcast %cst_14 : f32 to vector<1x32xf32>
    %16 = tpu.concatenate %15, %14, %15 in 0 : vector<1x32xf32>, vector<16x32xf32>, vector<1x32xf32> -> vector<18x32xf32>
    %17 = vector.extract_strided_slice %16 {offsets = [0, 0], sizes = [16, 32], strides = [1, 1]} : vector<18x32xf32> to vector<16x32xf32>
    %18 = vector.extract_strided_slice %16 {offsets = [1, 0], sizes = [16, 32], strides = [1, 1]} : vector<18x32xf32> to vector<16x32xf32>
    %19 = vector.extract_strided_slice %16 {offsets = [2, 0], sizes = [16, 32], strides = [1, 1]} : vector<18x32xf32> to vector<16x32xf32>
    %20 = tpu.concatenate %17, %18, %19 in 1 : vector<16x32xf32>, vector<16x32xf32>, vector<16x32xf32> -> vector<16x96xf32>
    %c0_15 = arith.constant 0 : index
    %c0_16 = arith.constant 0 : index
    %c0_17 = arith.constant 0 : index
    %21 = vector.load %arg7[%c0_15, %c0_16, %c0_17] : memref<2x96x32xf32, #tpu.memory_space<vmem>>, vector<1x96x32xf32>
    %22 = vector.shape_cast %21 : vector<1x96x32xf32> to vector<96x32xf32>
    %cst_18 = arith.constant dense<0.000000e+00> : vector<16x32xf32>
    %23 = tpu.matmul %20, %22, %cst_18 {dimension_numbers = #tpu.dot_dimension_numbers<[1], [0], [0], [1], [0, 0, 1, 1], [], []>} : vector<16x96xf32>, vector<96x32xf32>, vector<16x32xf32> -> vector<16x32xf32>
    %c0_19 = arith.constant 0 : index
    %c0_20 = arith.constant 0 : index
    %c0_21 = arith.constant 0 : index
    %24 = vector.load %arg8[%c0_19, %c0_20, %c0_21] : memref<2x1x32xf32, #tpu.memory_space<vmem>>, vector<1x1x32xf32>
    %25 = vector.shape_cast %24 : vector<1x1x32xf32> to vector<1x32xf32>
    %26 = vector.broadcast %25 : vector<1x32xf32> to vector<16x32xf32>
    %27 = arith.addf %23, %26 : vector<16x32xf32>
    %c0_22 = arith.constant 0 : index
    %c0_23 = arith.constant 0 : index
    %c0_24 = arith.constant 0 : index
    %28 = vector.load %arg9[%c0_22, %c0_23, %c0_24] : memref<2x32x96xf32, #tpu.memory_space<vmem>>, vector<1x32x96xf32>
    %29 = vector.shape_cast %28 : vector<1x32x96xf32> to vector<32x96xf32>
    %cst_25 = arith.constant dense<0.000000e+00> : vector<16x96xf32>
    %30 = tpu.matmul %14, %29, %cst_25 {dimension_numbers = #tpu.dot_dimension_numbers<[1], [0], [0], [1], [0, 0, 1, 1], [], []>} : vector<16x32xf32>, vector<32x96xf32>, vector<16x96xf32> -> vector<16x96xf32>
    %c0_26 = arith.constant 0 : index
    %c0_27 = arith.constant 0 : index
    %c0_28 = arith.constant 0 : index
    %31 = vector.load %arg10[%c0_26, %c0_27, %c0_28] : memref<2x1x96xf32, #tpu.memory_space<vmem>>, vector<1x1x96xf32>
    %32 = vector.shape_cast %31 : vector<1x1x96xf32> to vector<1x96xf32>
    %33 = vector.broadcast %32 : vector<1x96xf32> to vector<16x96xf32>
    %34 = arith.addf %30, %33 : vector<16x96xf32>
    %35 = vector.extract_strided_slice %34 {offsets = [0, 0], sizes = [16, 32], strides = [1, 1]} : vector<16x96xf32> to vector<16x32xf32>
    %36 = vector.extract_strided_slice %34 {offsets = [0, 32], sizes = [16, 32], strides = [1, 1]} : vector<16x96xf32> to vector<16x32xf32>
    %37 = tpu.concatenate %15, %36, %15 in 0 : vector<1x32xf32>, vector<16x32xf32>, vector<1x32xf32> -> vector<18x32xf32>
    %38 = vector.extract_strided_slice %34 {offsets = [0, 64], sizes = [16, 32], strides = [1, 1]} : vector<16x96xf32> to vector<16x32xf32>
    %39 = tpu.concatenate %15, %38, %15 in 0 : vector<1x32xf32>, vector<16x32xf32>, vector<1x32xf32> -> vector<18x32xf32>
    %40 = vector.extract_strided_slice %37 {offsets = [0, 0], sizes = [16, 32], strides = [1, 1]} : vector<18x32xf32> to vector<16x32xf32>
    %41 = arith.mulf %35, %40 : vector<16x32xf32>
    %cst_29 = arith.constant dense<0.000000e+00> : vector<16xf32>
    %42 = vector.multi_reduction <add>, %41, %cst_29 [1] : vector<16x32xf32> to vector<16xf32>
    %43 = vector.shape_cast %42 : vector<16xf32> to vector<16x1xf32>
    %44 = vector.extract_strided_slice %37 {offsets = [1, 0], sizes = [16, 32], strides = [1, 1]} : vector<18x32xf32> to vector<16x32xf32>
    %45 = arith.mulf %35, %44 : vector<16x32xf32>
    %cst_30 = arith.constant dense<0.000000e+00> : vector<16xf32>
    %46 = vector.multi_reduction <add>, %45, %cst_30 [1] : vector<16x32xf32> to vector<16xf32>
    %47 = vector.shape_cast %46 : vector<16xf32> to vector<16x1xf32>
    %48 = vector.extract_strided_slice %37 {offsets = [2, 0], sizes = [16, 32], strides = [1, 1]} : vector<18x32xf32> to vector<16x32xf32>
    %49 = arith.mulf %35, %48 : vector<16x32xf32>
    %cst_31 = arith.constant dense<0.000000e+00> : vector<16xf32>
    %50 = vector.multi_reduction <add>, %49, %cst_31 [1] : vector<16x32xf32> to vector<16xf32>
    %51 = vector.shape_cast %50 : vector<16xf32> to vector<16x1xf32>
    %52 = tpu.concatenate %43, %47, %51 in 1 : vector<16x1xf32>, vector<16x1xf32>, vector<16x1xf32> -> vector<16x3xf32>
    %cst_32 = arith.constant 0.176776692 : f32
    %53 = vector.broadcast %cst_32 : f32 to vector<16x3xf32>
    %54 = arith.mulf %52, %53 : vector<16x3xf32>
    %55 = tpu.iota {dimensions = array<i32: 0>} : vector<16x3xi32>
    %56 = tpu.iota {dimensions = array<i32: 1>} : vector<16x3xi32>
    %c1_i32 = arith.constant 1 : i32
    %57 = vector.broadcast %c1_i32 : i32 to vector<16x3xi32>
    %58 = arith.muli %56, %57 : vector<16x3xi32>
    %59 = arith.addi %55, %58 : vector<16x3xi32>
    %c1_i32_33 = arith.constant 1 : i32
    %60 = vector.broadcast %c1_i32_33 : i32 to vector<16x3xi32>
    %61 = arith.cmpi sge, %59, %60 : vector<16x3xi32>
    %c17_i32 = arith.constant 17 : i32
    %62 = vector.broadcast %c17_i32 : i32 to vector<16x3xi32>
    %63 = arith.cmpi slt, %59, %62 : vector<16x3xi32>
    %64 = arith.andi %61, %63 : vector<16x3xi1>
    %cst_34 = arith.constant 9.99999543E-7 : f32
    %cst_35 = arith.constant -13.8155107 : f32
    %65 = vector.broadcast %cst_34 : f32 to vector<16x3xf32>
    %66 = vector.broadcast %cst_35 : f32 to vector<16x3xf32>
    %67 = arith.select %64, %65, %66 : vector<16x3xi1>, vector<16x3xf32>
    %68 = arith.addf %54, %67 : vector<16x3xf32>
    %cst_36 = arith.constant dense<0xFF800000> : vector<16xf32>
    %69 = vector.multi_reduction <maximumf>, %68, %cst_36 [1] : vector<16x3xf32> to vector<16xf32>
    %70 = vector.shape_cast %69 : vector<16xf32> to vector<16x1xf32>
    %71 = vector.broadcast %70 : vector<16x1xf32> to vector<16x3xf32>
    %72 = arith.subf %68, %71 : vector<16x3xf32>
    %73 = math.exp %72 : vector<16x3xf32>
    %cst_37 = arith.constant dense<0.000000e+00> : vector<16xf32>
    %74 = vector.multi_reduction <add>, %73, %cst_37 [1] : vector<16x3xf32> to vector<16xf32>
    %75 = vector.shape_cast %74 : vector<16xf32> to vector<16x1xf32>
    %76 = vector.broadcast %75 : vector<16x1xf32> to vector<16x3xf32>
    %77 = arith.divf %73, %76 : vector<16x3xf32>
    %78 = arith.extui %64 : vector<16x3xi1> to vector<16x3xi32>
    %79 = arith.sitofp %78 : vector<16x3xi32> to vector<16x3xf32>
    %80 = arith.mulf %77, %79 : vector<16x3xf32>
    %cst_38 = arith.constant 0.000000e+00 : f32
    %81 = vector.broadcast %cst_38 : f32 to vector<16x32xf32>
    %82 = vector.extract_strided_slice %80 {offsets = [0, 0], sizes = [16, 1], strides = [1, 1]} : vector<16x3xf32> to vector<16x1xf32>
    %83 = vector.extract_strided_slice %39 {offsets = [0, 0], sizes = [16, 32], strides = [1, 1]} : vector<18x32xf32> to vector<16x32xf32>
    %84 = vector.broadcast %82 : vector<16x1xf32> to vector<16x32xf32>
    %85 = arith.mulf %84, %83 : vector<16x32xf32>
    %86 = arith.addf %81, %85 : vector<16x32xf32>
    %87 = vector.extract_strided_slice %80 {offsets = [0, 1], sizes = [16, 1], strides = [1, 1]} : vector<16x3xf32> to vector<16x1xf32>
    %88 = vector.extract_strided_slice %39 {offsets = [1, 0], sizes = [16, 32], strides = [1, 1]} : vector<18x32xf32> to vector<16x32xf32>
    %89 = vector.broadcast %87 : vector<16x1xf32> to vector<16x32xf32>
    %90 = arith.mulf %89, %88 : vector<16x32xf32>
    %91 = arith.addf %86, %90 : vector<16x32xf32>
    %92 = vector.extract_strided_slice %80 {offsets = [0, 2], sizes = [16, 1], strides = [1, 1]} : vector<16x3xf32> to vector<16x1xf32>
    %93 = vector.extract_strided_slice %39 {offsets = [2, 0], sizes = [16, 32], strides = [1, 1]} : vector<18x32xf32> to vector<16x32xf32>
    %94 = vector.broadcast %92 : vector<16x1xf32> to vector<16x32xf32>
    %95 = arith.mulf %94, %93 : vector<16x32xf32>
    %96 = arith.addf %91, %95 : vector<16x32xf32>
    %97 = arith.addf %27, %96 : vector<16x32xf32>
    %cst_39 = arith.constant dense<0.000000e+00> : vector<32xf32>
    %98 = vector.multi_reduction <add>, %97, %cst_39 [0] : vector<16x32xf32> to vector<32xf32>
    %99 = vector.shape_cast %98 : vector<32xf32> to vector<1x32xf32>
    %cst_40 = arith.constant 1.600000e+01 : f32
    %100 = vector.broadcast %cst_40 : f32 to vector<1x32xf32>
    %101 = arith.divf %99, %100 : vector<1x32xf32>
    %102 = arith.mulf %97, %97 : vector<16x32xf32>
    %cst_41 = arith.constant dense<0.000000e+00> : vector<32xf32>
    %103 = vector.multi_reduction <add>, %102, %cst_41 [0] : vector<16x32xf32> to vector<32xf32>
    %104 = vector.shape_cast %103 : vector<32xf32> to vector<1x32xf32>
    %cst_42 = arith.constant 1.600000e+01 : f32
    %105 = vector.broadcast %cst_42 : f32 to vector<1x32xf32>
    %106 = arith.divf %104, %105 : vector<1x32xf32>
    %107 = arith.mulf %101, %101 : vector<1x32xf32>
    %108 = arith.subf %106, %107 : vector<1x32xf32>
    %109 = vector.broadcast %101 : vector<1x32xf32> to vector<16x32xf32>
    %110 = arith.subf %97, %109 : vector<16x32xf32>
    %cst_43 = arith.constant 9.99999974E-6 : f32
    %111 = vector.broadcast %cst_43 : f32 to vector<1x32xf32>
    %112 = arith.addf %108, %111 : vector<1x32xf32>
    %113 = math.rsqrt %112 : vector<1x32xf32>
    %114 = vector.broadcast %113 : vector<1x32xf32> to vector<16x32xf32>
    %115 = arith.mulf %110, %114 : vector<16x32xf32>
    %c0_44 = arith.constant 0 : index
    %c0_45 = arith.constant 0 : index
    %c0_46 = arith.constant 0 : index
    %116 = vector.load %arg11[%c0_44, %c0_45, %c0_46] : memref<2x32x32xf32, #tpu.memory_space<vmem>>, vector<1x32x32xf32>
    %117 = vector.shape_cast %116 : vector<1x32x32xf32> to vector<32x32xf32>
    %cst_47 = arith.constant dense<0.000000e+00> : vector<16x32xf32>
    %118 = tpu.matmul %115, %117, %cst_47 {dimension_numbers = #tpu.dot_dimension_numbers<[1], [0], [0], [1], [0, 0, 1, 1], [], []>} : vector<16x32xf32>, vector<32x32xf32>, vector<16x32xf32> -> vector<16x32xf32>
    %c0_48 = arith.constant 0 : index
    %c0_49 = arith.constant 0 : index
    %c0_50 = arith.constant 0 : index
    %119 = vector.load %arg12[%c0_48, %c0_49, %c0_50] : memref<2x1x32xf32, #tpu.memory_space<vmem>>, vector<1x1x32xf32>
    %120 = vector.shape_cast %119 : vector<1x1x32xf32> to vector<1x32xf32>
    %121 = vector.broadcast %120 : vector<1x32xf32> to vector<16x32xf32>
    %122 = arith.addf %118, %121 : vector<16x32xf32>
    %cst_51 = arith.constant 0.000000e+00 : f32
    %123 = vector.broadcast %cst_51 : f32 to vector<16x32xf32>
    %124 = arith.maximumf %122, %123 : vector<16x32xf32>
    %c0_52 = arith.constant 0 : index
    %c0_53 = arith.constant 0 : index
    %c0_54 = arith.constant 0 : index
    %125 = vector.load %arg13[%c0_52, %c0_53, %c0_54] : memref<2x32x32xf32, #tpu.memory_space<vmem>>, vector<1x32x32xf32>
    %126 = vector.shape_cast %125 : vector<1x32x32xf32> to vector<32x32xf32>
    %cst_55 = arith.constant dense<0.000000e+00> : vector<16x32xf32>
    %127 = tpu.matmul %124, %126, %cst_55 {dimension_numbers = #tpu.dot_dimension_numbers<[1], [0], [0], [1], [0, 0, 1, 1], [], []>} : vector<16x32xf32>, vector<32x32xf32>, vector<16x32xf32> -> vector<16x32xf32>
    %c0_56 = arith.constant 0 : index
    %c0_57 = arith.constant 0 : index
    %c0_58 = arith.constant 0 : index
    %128 = vector.load %arg14[%c0_56, %c0_57, %c0_58] : memref<2x1x32xf32, #tpu.memory_space<vmem>>, vector<1x1x32xf32>
    %129 = vector.shape_cast %128 : vector<1x1x32xf32> to vector<1x32xf32>
    %130 = vector.broadcast %129 : vector<1x32xf32> to vector<16x32xf32>
    %131 = arith.addf %127, %130 : vector<16x32xf32>
    %132 = arith.addf %14, %131 : vector<16x32xf32>
    %cst_59 = arith.constant 0.000000e+00 : f32
    %133 = vector.broadcast %cst_59 : f32 to vector<2x32xf32>
    %134 = tpu.concatenate %133, %132, %133 in 0 : vector<2x32xf32>, vector<16x32xf32>, vector<2x32xf32> -> vector<20x32xf32>
    %135 = vector.extract_strided_slice %134 {offsets = [0, 0], sizes = [16, 32], strides = [1, 1]} : vector<20x32xf32> to vector<16x32xf32>
    %136 = vector.extract_strided_slice %134 {offsets = [2, 0], sizes = [16, 32], strides = [1, 1]} : vector<20x32xf32> to vector<16x32xf32>
    %137 = vector.extract_strided_slice %134 {offsets = [4, 0], sizes = [16, 32], strides = [1, 1]} : vector<20x32xf32> to vector<16x32xf32>
    %138 = tpu.concatenate %135, %136, %137 in 1 : vector<16x32xf32>, vector<16x32xf32>, vector<16x32xf32> -> vector<16x96xf32>
    %c1 = arith.constant 1 : index
    %c0_60 = arith.constant 0 : index
    %c0_61 = arith.constant 0 : index
    %139 = vector.load %arg7[%c1, %c0_60, %c0_61] : memref<2x96x32xf32, #tpu.memory_space<vmem>>, vector<1x96x32xf32>
    %140 = vector.shape_cast %139 : vector<1x96x32xf32> to vector<96x32xf32>
    %cst_62 = arith.constant dense<0.000000e+00> : vector<16x32xf32>
    %141 = tpu.matmul %138, %140, %cst_62 {dimension_numbers = #tpu.dot_dimension_numbers<[1], [0], [0], [1], [0, 0, 1, 1], [], []>} : vector<16x96xf32>, vector<96x32xf32>, vector<16x32xf32> -> vector<16x32xf32>
    %c1_63 = arith.constant 1 : index
    %c0_64 = arith.constant 0 : index
    %c0_65 = arith.constant 0 : index
    %142 = vector.load %arg8[%c1_63, %c0_64, %c0_65] : memref<2x1x32xf32, #tpu.memory_space<vmem>>, vector<1x1x32xf32>
    %143 = vector.shape_cast %142 : vector<1x1x32xf32> to vector<1x32xf32>
    %144 = vector.broadcast %143 : vector<1x32xf32> to vector<16x32xf32>
    %145 = arith.addf %141, %144 : vector<16x32xf32>
    %c1_66 = arith.constant 1 : index
    %c0_67 = arith.constant 0 : index
    %c0_68 = arith.constant 0 : index
    %146 = vector.load %arg9[%c1_66, %c0_67, %c0_68] : memref<2x32x96xf32, #tpu.memory_space<vmem>>, vector<1x32x96xf32>
    %147 = vector.shape_cast %146 : vector<1x32x96xf32> to vector<32x96xf32>
    %cst_69 = arith.constant dense<0.000000e+00> : vector<16x96xf32>
    %148 = tpu.matmul %132, %147, %cst_69 {dimension_numbers = #tpu.dot_dimension_numbers<[1], [0], [0], [1], [0, 0, 1, 1], [], []>} : vector<16x32xf32>, vector<32x96xf32>, vector<16x96xf32> -> vector<16x96xf32>
    %c1_70 = arith.constant 1 : index
    %c0_71 = arith.constant 0 : index
    %c0_72 = arith.constant 0 : index
    %149 = vector.load %arg10[%c1_70, %c0_71, %c0_72] : memref<2x1x96xf32, #tpu.memory_space<vmem>>, vector<1x1x96xf32>
    %150 = vector.shape_cast %149 : vector<1x1x96xf32> to vector<1x96xf32>
    %151 = vector.broadcast %150 : vector<1x96xf32> to vector<16x96xf32>
    %152 = arith.addf %148, %151 : vector<16x96xf32>
    %153 = vector.extract_strided_slice %152 {offsets = [0, 0], sizes = [16, 32], strides = [1, 1]} : vector<16x96xf32> to vector<16x32xf32>
    %154 = vector.extract_strided_slice %152 {offsets = [0, 32], sizes = [16, 32], strides = [1, 1]} : vector<16x96xf32> to vector<16x32xf32>
    %155 = tpu.concatenate %133, %154, %133 in 0 : vector<2x32xf32>, vector<16x32xf32>, vector<2x32xf32> -> vector<20x32xf32>
    %156 = vector.extract_strided_slice %152 {offsets = [0, 64], sizes = [16, 32], strides = [1, 1]} : vector<16x96xf32> to vector<16x32xf32>
    %157 = tpu.concatenate %133, %156, %133 in 0 : vector<2x32xf32>, vector<16x32xf32>, vector<2x32xf32> -> vector<20x32xf32>
    %158 = vector.extract_strided_slice %155 {offsets = [0, 0], sizes = [16, 32], strides = [1, 1]} : vector<20x32xf32> to vector<16x32xf32>
    %159 = arith.mulf %153, %158 : vector<16x32xf32>
    %cst_73 = arith.constant dense<0.000000e+00> : vector<16xf32>
    %160 = vector.multi_reduction <add>, %159, %cst_73 [1] : vector<16x32xf32> to vector<16xf32>
    %161 = vector.shape_cast %160 : vector<16xf32> to vector<16x1xf32>
    %162 = vector.extract_strided_slice %155 {offsets = [2, 0], sizes = [16, 32], strides = [1, 1]} : vector<20x32xf32> to vector<16x32xf32>
    %163 = arith.mulf %153, %162 : vector<16x32xf32>
    %cst_74 = arith.constant dense<0.000000e+00> : vector<16xf32>
    %164 = vector.multi_reduction <add>, %163, %cst_74 [1] : vector<16x32xf32> to vector<16xf32>
    %165 = vector.shape_cast %164 : vector<16xf32> to vector<16x1xf32>
    %166 = vector.extract_strided_slice %155 {offsets = [4, 0], sizes = [16, 32], strides = [1, 1]} : vector<20x32xf32> to vector<16x32xf32>
    %167 = arith.mulf %153, %166 : vector<16x32xf32>
    %cst_75 = arith.constant dense<0.000000e+00> : vector<16xf32>
    %168 = vector.multi_reduction <add>, %167, %cst_75 [1] : vector<16x32xf32> to vector<16xf32>
    %169 = vector.shape_cast %168 : vector<16xf32> to vector<16x1xf32>
    %170 = tpu.concatenate %161, %165, %169 in 1 : vector<16x1xf32>, vector<16x1xf32>, vector<16x1xf32> -> vector<16x3xf32>
    %cst_76 = arith.constant 0.176776692 : f32
    %171 = vector.broadcast %cst_76 : f32 to vector<16x3xf32>
    %172 = arith.mulf %170, %171 : vector<16x3xf32>
    %173 = tpu.iota {dimensions = array<i32: 0>} : vector<16x3xi32>
    %174 = tpu.iota {dimensions = array<i32: 1>} : vector<16x3xi32>
    %c2_i32 = arith.constant 2 : i32
    %175 = vector.broadcast %c2_i32 : i32 to vector<16x3xi32>
    %176 = arith.muli %174, %175 : vector<16x3xi32>
    %177 = arith.addi %173, %176 : vector<16x3xi32>
    %c2_i32_77 = arith.constant 2 : i32
    %178 = vector.broadcast %c2_i32_77 : i32 to vector<16x3xi32>
    %179 = arith.cmpi sge, %177, %178 : vector<16x3xi32>
    %c18_i32 = arith.constant 18 : i32
    %180 = vector.broadcast %c18_i32 : i32 to vector<16x3xi32>
    %181 = arith.cmpi slt, %177, %180 : vector<16x3xi32>
    %182 = arith.andi %179, %181 : vector<16x3xi1>
    %cst_78 = arith.constant 9.99999543E-7 : f32
    %cst_79 = arith.constant -13.8155107 : f32
    %183 = vector.broadcast %cst_78 : f32 to vector<16x3xf32>
    %184 = vector.broadcast %cst_79 : f32 to vector<16x3xf32>
    %185 = arith.select %182, %183, %184 : vector<16x3xi1>, vector<16x3xf32>
    %186 = arith.addf %172, %185 : vector<16x3xf32>
    %cst_80 = arith.constant dense<0xFF800000> : vector<16xf32>
    %187 = vector.multi_reduction <maximumf>, %186, %cst_80 [1] : vector<16x3xf32> to vector<16xf32>
    %188 = vector.shape_cast %187 : vector<16xf32> to vector<16x1xf32>
    %189 = vector.broadcast %188 : vector<16x1xf32> to vector<16x3xf32>
    %190 = arith.subf %186, %189 : vector<16x3xf32>
    %191 = math.exp %190 : vector<16x3xf32>
    %cst_81 = arith.constant dense<0.000000e+00> : vector<16xf32>
    %192 = vector.multi_reduction <add>, %191, %cst_81 [1] : vector<16x3xf32> to vector<16xf32>
    %193 = vector.shape_cast %192 : vector<16xf32> to vector<16x1xf32>
    %194 = vector.broadcast %193 : vector<16x1xf32> to vector<16x3xf32>
    %195 = arith.divf %191, %194 : vector<16x3xf32>
    %196 = arith.extui %182 : vector<16x3xi1> to vector<16x3xi32>
    %197 = arith.sitofp %196 : vector<16x3xi32> to vector<16x3xf32>
    %198 = arith.mulf %195, %197 : vector<16x3xf32>
    %cst_82 = arith.constant 0.000000e+00 : f32
    %199 = vector.broadcast %cst_82 : f32 to vector<16x32xf32>
    %200 = vector.extract_strided_slice %198 {offsets = [0, 0], sizes = [16, 1], strides = [1, 1]} : vector<16x3xf32> to vector<16x1xf32>
    %201 = vector.extract_strided_slice %157 {offsets = [0, 0], sizes = [16, 32], strides = [1, 1]} : vector<20x32xf32> to vector<16x32xf32>
    %202 = vector.broadcast %200 : vector<16x1xf32> to vector<16x32xf32>
    %203 = arith.mulf %202, %201 : vector<16x32xf32>
    %204 = arith.addf %199, %203 : vector<16x32xf32>
    %205 = vector.extract_strided_slice %198 {offsets = [0, 1], sizes = [16, 1], strides = [1, 1]} : vector<16x3xf32> to vector<16x1xf32>
    %206 = vector.extract_strided_slice %157 {offsets = [2, 0], sizes = [16, 32], strides = [1, 1]} : vector<20x32xf32> to vector<16x32xf32>
    %207 = vector.broadcast %205 : vector<16x1xf32> to vector<16x32xf32>
    %208 = arith.mulf %207, %206 : vector<16x32xf32>
    %209 = arith.addf %204, %208 : vector<16x32xf32>
    %210 = vector.extract_strided_slice %198 {offsets = [0, 2], sizes = [16, 1], strides = [1, 1]} : vector<16x3xf32> to vector<16x1xf32>
    %211 = vector.extract_strided_slice %157 {offsets = [4, 0], sizes = [16, 32], strides = [1, 1]} : vector<20x32xf32> to vector<16x32xf32>
    %212 = vector.broadcast %210 : vector<16x1xf32> to vector<16x32xf32>
    %213 = arith.mulf %212, %211 : vector<16x32xf32>
    %214 = arith.addf %209, %213 : vector<16x32xf32>
    %215 = arith.addf %145, %214 : vector<16x32xf32>
    %cst_83 = arith.constant dense<0.000000e+00> : vector<32xf32>
    %216 = vector.multi_reduction <add>, %215, %cst_83 [0] : vector<16x32xf32> to vector<32xf32>
    %217 = vector.shape_cast %216 : vector<32xf32> to vector<1x32xf32>
    %cst_84 = arith.constant 1.600000e+01 : f32
    %218 = vector.broadcast %cst_84 : f32 to vector<1x32xf32>
    %219 = arith.divf %217, %218 : vector<1x32xf32>
    %220 = arith.mulf %215, %215 : vector<16x32xf32>
    %cst_85 = arith.constant dense<0.000000e+00> : vector<32xf32>
    %221 = vector.multi_reduction <add>, %220, %cst_85 [0] : vector<16x32xf32> to vector<32xf32>
    %222 = vector.shape_cast %221 : vector<32xf32> to vector<1x32xf32>
    %cst_86 = arith.constant 1.600000e+01 : f32
    %223 = vector.broadcast %cst_86 : f32 to vector<1x32xf32>
    %224 = arith.divf %222, %223 : vector<1x32xf32>
    %225 = arith.mulf %219, %219 : vector<1x32xf32>
    %226 = arith.subf %224, %225 : vector<1x32xf32>
    %227 = vector.broadcast %219 : vector<1x32xf32> to vector<16x32xf32>
    %228 = arith.subf %215, %227 : vector<16x32xf32>
    %cst_87 = arith.constant 9.99999974E-6 : f32
    %229 = vector.broadcast %cst_87 : f32 to vector<1x32xf32>
    %230 = arith.addf %226, %229 : vector<1x32xf32>
    %231 = math.rsqrt %230 : vector<1x32xf32>
    %232 = vector.broadcast %231 : vector<1x32xf32> to vector<16x32xf32>
    %233 = arith.mulf %228, %232 : vector<16x32xf32>
    %c1_88 = arith.constant 1 : index
    %c0_89 = arith.constant 0 : index
    %c0_90 = arith.constant 0 : index
    %234 = vector.load %arg11[%c1_88, %c0_89, %c0_90] : memref<2x32x32xf32, #tpu.memory_space<vmem>>, vector<1x32x32xf32>
    %235 = vector.shape_cast %234 : vector<1x32x32xf32> to vector<32x32xf32>
    %cst_91 = arith.constant dense<0.000000e+00> : vector<16x32xf32>
    %236 = tpu.matmul %233, %235, %cst_91 {dimension_numbers = #tpu.dot_dimension_numbers<[1], [0], [0], [1], [0, 0, 1, 1], [], []>} : vector<16x32xf32>, vector<32x32xf32>, vector<16x32xf32> -> vector<16x32xf32>
    %c1_92 = arith.constant 1 : index
    %c0_93 = arith.constant 0 : index
    %c0_94 = arith.constant 0 : index
    %237 = vector.load %arg12[%c1_92, %c0_93, %c0_94] : memref<2x1x32xf32, #tpu.memory_space<vmem>>, vector<1x1x32xf32>
    %238 = vector.shape_cast %237 : vector<1x1x32xf32> to vector<1x32xf32>
    %239 = vector.broadcast %238 : vector<1x32xf32> to vector<16x32xf32>
    %240 = arith.addf %236, %239 : vector<16x32xf32>
    %cst_95 = arith.constant 0.000000e+00 : f32
    %241 = vector.broadcast %cst_95 : f32 to vector<16x32xf32>
    %242 = arith.maximumf %240, %241 : vector<16x32xf32>
    %c1_96 = arith.constant 1 : index
    %c0_97 = arith.constant 0 : index
    %c0_98 = arith.constant 0 : index
    %243 = vector.load %arg13[%c1_96, %c0_97, %c0_98] : memref<2x32x32xf32, #tpu.memory_space<vmem>>, vector<1x32x32xf32>
    %244 = vector.shape_cast %243 : vector<1x32x32xf32> to vector<32x32xf32>
    %cst_99 = arith.constant dense<0.000000e+00> : vector<16x32xf32>
    %245 = tpu.matmul %242, %244, %cst_99 {dimension_numbers = #tpu.dot_dimension_numbers<[1], [0], [0], [1], [0, 0, 1, 1], [], []>} : vector<16x32xf32>, vector<32x32xf32>, vector<16x32xf32> -> vector<16x32xf32>
    %c1_100 = arith.constant 1 : index
    %c0_101 = arith.constant 0 : index
    %c0_102 = arith.constant 0 : index
    %246 = vector.load %arg14[%c1_100, %c0_101, %c0_102] : memref<2x1x32xf32, #tpu.memory_space<vmem>>, vector<1x1x32xf32>
    %247 = vector.shape_cast %246 : vector<1x1x32xf32> to vector<1x32xf32>
    %248 = vector.broadcast %247 : vector<1x32xf32> to vector<16x32xf32>
    %249 = arith.addf %245, %248 : vector<16x32xf32>
    %250 = arith.addf %132, %249 : vector<16x32xf32>
    %c0_103 = arith.constant 0 : index
    %c0_104 = arith.constant 0 : index
    %251 = vector.load %arg15[%c0_103, %c0_104] : memref<32x8xf32, #tpu.memory_space<vmem>>, vector<32x8xf32>
    %cst_105 = arith.constant dense<0.000000e+00> : vector<16x8xf32>
    %252 = tpu.matmul %250, %251, %cst_105 {dimension_numbers = #tpu.dot_dimension_numbers<[1], [0], [0], [1], [0, 0, 1, 1], [], []>} : vector<16x32xf32>, vector<32x8xf32>, vector<16x8xf32> -> vector<16x8xf32>
    %c0_106 = arith.constant 0 : index
    %c0_107 = arith.constant 0 : index
    %253 = vector.load %arg16[%c0_106, %c0_107] : memref<1x8xf32, #tpu.memory_space<vmem>>, vector<1x8xf32>
    %254 = vector.broadcast %253 : vector<1x8xf32> to vector<16x8xf32>
    %255 = arith.addf %252, %254 : vector<16x8xf32>
    %256 = tpu.transpose %255, [1, 0] : vector<16x8xf32> -> vector<8x16xf32>
    %c0_108 = arith.constant 0 : index
    %c0_109 = arith.constant 0 : index
    %c0_110 = arith.constant 0 : index
    %257 = vector.load %arg17[%c0_108, %c0_109, %c0_110] : memref<1x8x16xf32, #tpu.memory_space<vmem>>, vector<1x8x16xf32>
    %258 = vector.shape_cast %257 : vector<1x8x16xf32> to vector<8x16xf32>
    %259 = vector.shape_cast %256 : vector<8x16xf32> to vector<1x8x16xf32>
    tpu.vector_store %arg17[%c0_108, %c0_109, %c0_110], %259 {strides = array<i32>} : memref<1x8x16xf32, #tpu.memory_space<vmem>>, vector<1x8x16xf32>,
    return
  }
  func.func @transform_0(%arg0: i32) -> (i32, i32) {
    %c0_i32 = arith.constant 0 : i32
    %c0_i32_0 = arith.constant 0 : i32
    %c0_i32_1 = arith.constant 0 : i32
    return %c0_i32, %c0_i32_0 : i32, i32
  }
  func.func @transform_1(%arg0: i32) -> (i32, i32, i32) {
    %c0_i32 = arith.constant 0 : i32
    %c0_i32_0 = arith.constant 0 : i32
    %c0_i32_1 = arith.constant 0 : i32
    return %arg0, %c0_i32, %c0_i32_0 : i32, i32, i32
  }
  func.func @transform_2(%arg0: i32) -> (i32, i32, i32) {
    %c0_i32 = arith.constant 0 : i32
    %c0_i32_0 = arith.constant 0 : i32
    %c0_i32_1 = arith.constant 0 : i32
    return %arg0, %c0_i32, %c0_i32_0 : i32, i32, i32
  }
  func.func @transform_3(%arg0: i32) -> (i32, i32) {
    %c0_i32 = arith.constant 0 : i32
    %c0_i32_0 = arith.constant 0 : i32
    %c0_i32_1 = arith.constant 0 : i32
    return %c0_i32, %c0_i32_0 : i32, i32
  }
  func.func @transform_4(%arg0: i32) -> (i32, i32) {
    %c0_i32 = arith.constant 0 : i32
    %c0_i32_0 = arith.constant 0 : i32
    %c0_i32_1 = arith.constant 0 : i32
    return %c0_i32, %c0_i32_0 : i32, i32
  }
  func.func @transform_5(%arg0: i32) -> (i32, i32) {
    %c0_i32 = arith.constant 0 : i32
    %c0_i32_0 = arith.constant 0 : i32
    %c0_i32_1 = arith.constant 0 : i32
    return %c0_i32, %c0_i32_0 : i32, i32
  }
  func.func @transform_6(%arg0: i32) -> (i32, i32, i32) {
    %c0_i32 = arith.constant 0 : i32
    %c0_i32_0 = arith.constant 0 : i32
    %c0_i32_1 = arith.constant 0 : i32
    %c0_i32_2 = arith.constant 0 : i32
    return %c0_i32, %c0_i32_0, %c0_i32_1 : i32, i32, i32
  }
  func.func @transform_7(%arg0: i32) -> (i32, i32, i32) {
    %c0_i32 = arith.constant 0 : i32
    %c0_i32_0 = arith.constant 0 : i32
    %c0_i32_1 = arith.constant 0 : i32
    %c0_i32_2 = arith.constant 0 : i32
    return %c0_i32, %c0_i32_0, %c0_i32_1 : i32, i32, i32
  }
  func.func @transform_8(%arg0: i32) -> (i32, i32, i32) {
    %c0_i32 = arith.constant 0 : i32
    %c0_i32_0 = arith.constant 0 : i32
    %c0_i32_1 = arith.constant 0 : i32
    %c0_i32_2 = arith.constant 0 : i32
    return %c0_i32, %c0_i32_0, %c0_i32_1 : i32, i32, i32
  }
  func.func @transform_9(%arg0: i32) -> (i32, i32, i32) {
    %c0_i32 = arith.constant 0 : i32
    %c0_i32_0 = arith.constant 0 : i32
    %c0_i32_1 = arith.constant 0 : i32
    %c0_i32_2 = arith.constant 0 : i32
    return %c0_i32, %c0_i32_0, %c0_i32_1 : i32, i32, i32
  }
  func.func @transform_10(%arg0: i32) -> (i32, i32, i32) {
    %c0_i32 = arith.constant 0 : i32
    %c0_i32_0 = arith.constant 0 : i32
    %c0_i32_1 = arith.constant 0 : i32
    %c0_i32_2 = arith.constant 0 : i32
    return %c0_i32, %c0_i32_0, %c0_i32_1 : i32, i32, i32
  }
  func.func @transform_11(%arg0: i32) -> (i32, i32, i32) {
    %c0_i32 = arith.constant 0 : i32
    %c0_i32_0 = arith.constant 0 : i32
    %c0_i32_1 = arith.constant 0 : i32
    %c0_i32_2 = arith.constant 0 : i32
    return %c0_i32, %c0_i32_0, %c0_i32_1 : i32, i32, i32
  }
  func.func @transform_12(%arg0: i32) -> (i32, i32, i32) {
    %c0_i32 = arith.constant 0 : i32
    %c0_i32_0 = arith.constant 0 : i32
    %c0_i32_1 = arith.constant 0 : i32
    %c0_i32_2 = arith.constant 0 : i32
    return %c0_i32, %c0_i32_0, %c0_i32_1 : i32, i32, i32
  }
  func.func @transform_13(%arg0: i32) -> (i32, i32, i32) {
    %c0_i32 = arith.constant 0 : i32
    %c0_i32_0 = arith.constant 0 : i32
    %c0_i32_1 = arith.constant 0 : i32
    %c0_i32_2 = arith.constant 0 : i32
    return %c0_i32, %c0_i32_0, %c0_i32_1 : i32, i32, i32
  }
  func.func @transform_14(%arg0: i32) -> (i32, i32) {
    %c0_i32 = arith.constant 0 : i32
    %c0_i32_0 = arith.constant 0 : i32
    %c0_i32_1 = arith.constant 0 : i32
    return %c0_i32, %c0_i32_0 : i32, i32
  }
  func.func @transform_15(%arg0: i32) -> (i32, i32) {
    %c0_i32 = arith.constant 0 : i32
    %c0_i32_0 = arith.constant 0 : i32
    %c0_i32_1 = arith.constant 0 : i32
    return %c0_i32, %c0_i32_0 : i32, i32
  }
  func.func @transform_16(%arg0: i32) -> (i32, i32, i32) {
    %c0_i32 = arith.constant 0 : i32
    %c0_i32_0 = arith.constant 0 : i32
    %c0_i32_1 = arith.constant 0 : i32
    return %arg0, %c0_i32, %c0_i32_0 : i32, i32, i32
  }
}

</mosaic_0001>

<llo_original>
// kernel: tpu_custom_call.1
$region0: #{tpu_custom_call.1}
  #allocation0 [shape = 'u32[]', space=smem, size = 0x4, offset = 0x4, fixed_abs, tag = 'smem constant byte address 0x4 - core index']
  #allocation1 [shape = 'u32[72,128]{1,0:T(1,128)}', space=vmem, size = 0x9000, scoped, tag = 'internal scratch']
  %s0 = inlined_call_operand.vmem [shape: f32[1,32], index: 0, kind: input, shape index: {}]
  %s1 = inlined_call_operand.vmem [shape: f32[2,64,16], index: 1, kind: input, shape index: {}]
  %s2 = inlined_call_operand.vmem [shape: f32[2,8,16], index: 2, kind: input, shape index: {}]
  %s3 = inlined_call_operand.vmem [shape: f32[64,32], index: 3, kind: input, shape index: {}]
  %s4 = inlined_call_operand.vmem [shape: f32[8,32], index: 4, kind: input, shape index: {}]
  %s5 = inlined_call_operand.vmem [shape: f32[1,32], index: 5, kind: input, shape index: {}]
  %s6 = inlined_call_operand.vmem [shape: f32[2,96,32], index: 6, kind: input, shape index: {}]
  %s7 = inlined_call_operand.vmem [shape: f32[2,1,32], index: 7, kind: input, shape index: {}]
  %s8 = inlined_call_operand.vmem [shape: f32[2,32,96], index: 8, kind: input, shape index: {}]
  %s9 = inlined_call_operand.vmem [shape: f32[2,1,96], index: 9, kind: input, shape index: {}]
  %s10 = inlined_call_operand.vmem [shape: f32[2,32,32], index: 10, kind: input, shape index: {}]
  %s11 = inlined_call_operand.vmem [shape: f32[2,1,32], index: 11, kind: input, shape index: {}]
  %s12 = inlined_call_operand.vmem [shape: f32[2,32,32], index: 12, kind: input, shape index: {}]
  %s13 = inlined_call_operand.vmem [shape: f32[2,1,32], index: 13, kind: input, shape index: {}]
  %s14 = inlined_call_operand.vmem [shape: f32[32,8], index: 14, kind: input, shape index: {}]
  %s15 = inlined_call_operand.vmem [shape: f32[1,8], index: 15, kind: input, shape index: {}]
  %s16 = inlined_call_operand.hbm [shape: f32[2,8,16], index: 16, kind: output, shape index: {}]
  %s17 = sld [smem:[#allocation0]]
  $region97: #{tpu_custom_call.1} parent=0
    _
  %s19 = ssub.s32 1, %s17
  %s20 = scalar_select 0, %s19, %s17
  $region1: #{tpu_custom_call.1} parent=0
    #allocation2 [shape = 'u8[8192]{0}', space=vmem, size = 0x2000, scoped, tag = 'output window, operand 0']
    #allocation3 [shape = 's32[2]{0}', space=sflag, size = 0x8, scoped, tag = 'scoped memory for tpu_custom_call.1']
    %21 = vsyncpa [#allocation3], 0
    %s22 = scalar_lea.sflag [#allocation3], 1
    %23 = vsyncpa %s22, 0
    loop: start=0, step=1, limit=4
    $region2: #{tpu_custom_call.1} parent=1 // loop_pre_header
      _
    $region3: #{tpu_custom_call.1} parent=1 // loop_header
      %s25 = sphi 0, %s29
      %p26 = scmp.ge.s32.totalorder %s25, 4
      %s33 = sphi 0, %s33
      %s35 = sphi 0, %s33
      %s36 = sphi 0, %s35
      %s50 = sphi 0, %s36
      %s56 = sphi 0, %s58
      %s59 = sphi 0, %s56
      %s60 = sphi 0, %s59
      %s76 = sphi 0, %s60
      %s82 = sphi 0, %s84
      %s85 = sphi 0, %s82
      %s86 = sphi 0, %s85
      %s102 = sphi 0, %s86
      %s106 = sphi 0, %s106
      %s108 = sphi 0, %s106
      %s109 = sphi 0, %s108
      %s123 = sphi 0, %s109
      %s127 = sphi 0, %s127
      %s129 = sphi 0, %s127
      %s130 = sphi 0, %s129
      %s144 = sphi 0, %s130
      %s148 = sphi 0, %s148
      %s150 = sphi 0, %s148
      %s151 = sphi 0, %s150
      %s165 = sphi 0, %s151
      %s169 = sphi 0, %s169
      %s171 = sphi 0, %s169
      %s172 = sphi 0, %s171
      %s186 = sphi 0, %s172
      %s190 = sphi 0, %s190
      %s192 = sphi 0, %s190
      %s193 = sphi 0, %s192
      %s207 = sphi 0, %s193
      %s211 = sphi 0, %s211
      %s213 = sphi 0, %s211
      %s214 = sphi 0, %s213
      %s228 = sphi 0, %s214
      %s232 = sphi 0, %s232
      %s234 = sphi 0, %s232
      %s235 = sphi 0, %s234
      %s249 = sphi 0, %s235
      %s253 = sphi 0, %s253
      %s255 = sphi 0, %s253
      %s256 = sphi 0, %s255
      %s270 = sphi 0, %s256
      %s274 = sphi 0, %s274
      %s276 = sphi 0, %s274
      %s277 = sphi 0, %s276
      %s291 = sphi 0, %s277
      %s295 = sphi 0, %s295
      %s297 = sphi 0, %s295
      %s298 = sphi 0, %s297
      %s312 = sphi 0, %s298
      %s316 = sphi 0, %s316
      %s318 = sphi 0, %s316
      %s319 = sphi 0, %s318
      %s333 = sphi 0, %s319
      %s337 = sphi 0, %s337
      %s339 = sphi 0, %s337
      %s340 = sphi 0, %s339
      %s354 = sphi 0, %s340
      %s358 = sphi 0, %s358
      %s360 = sphi 0, %s358
      %s361 = sphi 0, %s360
      %s375 = sphi 0, %s361
      %s381 = sphi 0, %s383
      %s384 = sphi 0, %s381
      %s385 = sphi 0, %s384
      %s401 = sphi 0, %s385
    $region4: #{tpu_custom_call.1} parent=1 // loop_header_branch
      %28 = sbr.rel (%p26) target = $region8
    $region5: #{tpu_custom_call.1} parent=1 // loop_body
      %s30 = ssub.s32 %s25, 1
      %s31 = ssub.s32 %s25, 2
      %s32 = sadd.s32 %s25, 1
      %s34 = sadd.s32 %s33, 1
      %p37 = scmp.eq.s32.totalorder %s25, 1
      %p38 = scmp.ne.s32.totalorder %s33, %s35
      %p39 = scmp.eq.s32.totalorder %s25, 0
      %p40 = por %p38, %p39
      %p41 = scmp.ne.s32.totalorder %s33, %s35
      %p42 = scmp.eq.s32.totalorder %s30, 1
      %p43 = por %p41, %p42
      %p44 = scmp.ne.s32.totalorder %s35, %s36
      %p45 = scmp.eq.s32.totalorder %s30, 0
      %p46 = por %p44, %p45
      %p47 = scmp.ne.s32.totalorder %s35, %s36
      %p48 = scmp.eq.s32.totalorder %s31, 1
      %p49 = por %p47, %p48
      %p51 = scmp.ne.s32.totalorder %s36, %s50
      %p52 = scmp.eq.s32.totalorder %s31, 0
      %p53 = por %p51, %p52
      %s54 = ssub.s32 %s25, %s32
      %p55 = scmp.eq.s32.totalorder %s54, 0
      %s57 = sadd.s32 %s56, 1
      %s58 = scalar_select %p55, %s56, %s57
      %p61 = pneg %p55
      %p62 = scmp.eq.s32.totalorder %s25, 1
      %p63 = por %p61, %p62
      %p64 = scmp.ne.s32.totalorder %s56, %s59
      %p65 = scmp.eq.s32.totalorder %s25, 0
      %p66 = por %p64, %p65
      %p67 = scmp.ne.s32.totalorder %s56, %s59
      %p68 = scmp.eq.s32.totalorder %s30, 1
      %p69 = por %p67, %p68
      %p70 = scmp.ne.s32.totalorder %s59, %s60
      %p71 = scmp.eq.s32.totalorder %s30, 0
      %p72 = por %p70, %p71
      %p73 = scmp.ne.s32.totalorder %s59, %s60
      %p74 = scmp.eq.s32.totalorder %s31, 1
      %p75 = por %p73, %p74
      %p77 = scmp.ne.s32.totalorder %s60, %s76
      %p78 = scmp.eq.s32.totalorder %s31, 0
      %p79 = por %p77, %p78
      %s80 = ssub.s32 %s25, %s32
      %p81 = scmp.eq.s32.totalorder %s80, 0
      %s83 = sadd.s32 %s82, 1
      %s84 = scalar_select %p81, %s82, %s83
      %p87 = pneg %p81
      %p88 = scmp.eq.s32.totalorder %s25, 1
      %p89 = por %p87, %p88
      %p90 = scmp.ne.s32.totalorder %s82, %s85
      %p91 = scmp.eq.s32.totalorder %s25, 0
      %p92 = por %p90, %p91
      %p93 = scmp.ne.s32.totalorder %s82, %s85
      %p94 = scmp.eq.s32.totalorder %s30, 1
      %p95 = por %p93, %p94
      %p96 = scmp.ne.s32.totalorder %s85, %s86
      %p97 = scmp.eq.s32.totalorder %s30, 0
      %p98 = por %p96, %p97
      %p99 = scmp.ne.s32.totalorder %s85, %s86
      %p100 = scmp.eq.s32.totalorder %s31, 1
      %p101 = por %p99, %p100
      %p103 = scmp.ne.s32.totalorder %s86, %s102
      %p104 = scmp.eq.s32.totalorder %s31, 0
      %p105 = por %p103, %p104
      %s107 = sadd.s32 %s106, 1
      %p110 = scmp.eq.s32.totalorder %s25, 1
      %p111 = scmp.ne.s32.totalorder %s106, %s108
      %p112 = scmp.eq.s32.totalorder %s25, 0
      %p113 = por %p111, %p112
      %p114 = scmp.ne.s32.totalorder %s106, %s108
      %p115 = scmp.eq.s32.totalorder %s30, 1
      %p116 = por %p114, %p115
      %p117 = scmp.ne.s32.totalorder %s108, %s109
      %p118 = scmp.eq.s32.totalorder %s30, 0
      %p119 = por %p117, %p118
      %p120 = scmp.ne.s32.totalorder %s108, %s109
      %p121 = scmp.eq.s32.totalorder %s31, 1
      %p122 = por %p120, %p121
      %p124 = scmp.ne.s32.totalorder %s109, %s123
      %p125 = scmp.eq.s32.totalorder %s31, 0
      %p126 = por %p124, %p125
      %s128 = sadd.s32 %s127, 1
      %p131 = scmp.eq.s32.totalorder %s25, 1
      %p132 = scmp.ne.s32.totalorder %s127, %s129
      %p133 = scmp.eq.s32.totalorder %s25, 0
      %p134 = por %p132, %p133
      %p135 = scmp.ne.s32.totalorder %s127, %s129
      %p136 = scmp.eq.s32.totalorder %s30, 1
      %p137 = por %p135, %p136
      %p138 = scmp.ne.s32.totalorder %s129, %s130
      %p139 = scmp.eq.s32.totalorder %s30, 0
      %p140 = por %p138, %p139
      %p141 = scmp.ne.s32.totalorder %s129, %s130
      %p142 = scmp.eq.s32.totalorder %s31, 1
      %p143 = por %p141, %p142
      %p145 = scmp.ne.s32.totalorder %s130, %s144
      %p146 = scmp.eq.s32.totalorder %s31, 0
      %p147 = por %p145, %p146
      %s149 = sadd.s32 %s148, 1
      %p152 = scmp.eq.s32.totalorder %s25, 1
      %p153 = scmp.ne.s32.totalorder %s148, %s150
      %p154 = scmp.eq.s32.totalorder %s25, 0
      %p155 = por %p153, %p154
      %p156 = scmp.ne.s32.totalorder %s148, %s150
      %p157 = scmp.eq.s32.totalorder %s30, 1
      %p158 = por %p156, %p157
      %p159 = scmp.ne.s32.totalorder %s150, %s151
      %p160 = scmp.eq.s32.totalorder %s30, 0
      %p161 = por %p159, %p160
      %p162 = scmp.ne.s32.totalorder %s150, %s151
      %p163 = scmp.eq.s32.totalorder %s31, 1
      %p164 = por %p162, %p163
      %p166 = scmp.ne.s32.totalorder %s151, %s165
      %p167 = scmp.eq.s32.totalorder %s31, 0
      %p168 = por %p166, %p167
      %s170 = sadd.s32 %s169, 1
      %p173 = scmp.eq.s32.totalorder %s25, 1
      %p174 = scmp.ne.s32.totalorder %s169, %s171
      %p175 = scmp.eq.s32.totalorder %s25, 0
      %p176 = por %p174, %p175
      %p177 = scmp.ne.s32.totalorder %s169, %s171
      %p178 = scmp.eq.s32.totalorder %s30, 1
      %p179 = por %p177, %p178
      %p180 = scmp.ne.s32.totalorder %s171, %s172
      %p181 = scmp.eq.s32.totalorder %s30, 0
      %p182 = por %p180, %p181
      %p183 = scmp.ne.s32.totalorder %s171, %s172
      %p184 = scmp.eq.s32.totalorder %s31, 1
      %p185 = por %p183, %p184
      %p187 = scmp.ne.s32.totalorder %s172, %s186
      %p188 = scmp.eq.s32.totalorder %s31, 0
      %p189 = por %p187, %p188
      %s191 = sadd.s32 %s190, 1
      %p194 = scmp.eq.s32.totalorder %s25, 1
      %p195 = scmp.ne.s32.totalorder %s190, %s192
      %p196 = scmp.eq.s32.totalorder %s25, 0
      %p197 = por %p195, %p196
      %p198 = scmp.ne.s32.totalorder %s190, %s192
      %p199 = scmp.eq.s32.totalorder %s30, 1
      %p200 = por %p198, %p199
      %p201 = scmp.ne.s32.totalorder %s192, %s193
      %p202 = scmp.eq.s32.totalorder %s30, 0
      %p203 = por %p201, %p202
      %p204 = scmp.ne.s32.totalorder %s192, %s193
      %p205 = scmp.eq.s32.totalorder %s31, 1
      %p206 = por %p204, %p205
      %p208 = scmp.ne.s32.totalorder %s193, %s207
      %p209 = scmp.eq.s32.totalorder %s31, 0
      %p210 = por %p208, %p209
      %s212 = sadd.s32 %s211, 1
      %p215 = scmp.eq.s32.totalorder %s25, 1
      %p216 = scmp.ne.s32.totalorder %s211, %s213
      %p217 = scmp.eq.s32.totalorder %s25, 0
      %p218 = por %p216, %p217
      %p219 = scmp.ne.s32.totalorder %s211, %s213
      %p220 = scmp.eq.s32.totalorder %s30, 1
      %p221 = por %p219, %p220
      %p222 = scmp.ne.s32.totalorder %s213, %s214
      %p223 = scmp.eq.s32.totalorder %s30, 0
      %p224 = por %p222, %p223
      %p225 = scmp.ne.s32.totalorder %s213, %s214
      %p226 = scmp.eq.s32.totalorder %s31, 1
      %p227 = por %p225, %p226
      %p229 = scmp.ne.s32.totalorder %s214, %s228
      %p230 = scmp.eq.s32.totalorder %s31, 0
      %p231 = por %p229, %p230
      %s233 = sadd.s32 %s232, 1
      %p236 = scmp.eq.s32.totalorder %s25, 1
      %p237 = scmp.ne.s32.totalorder %s232, %s234
      %p238 = scmp.eq.s32.totalorder %s25, 0
      %p239 = por %p237, %p238
      %p240 = scmp.ne.s32.totalorder %s232, %s234
      %p241 = scmp.eq.s32.totalorder %s30, 1
      %p242 = por %p240, %p241
      %p243 = scmp.ne.s32.totalorder %s234, %s235
      %p244 = scmp.eq.s32.totalorder %s30, 0
      %p245 = por %p243, %p244
      %p246 = scmp.ne.s32.totalorder %s234, %s235
      %p247 = scmp.eq.s32.totalorder %s31, 1
      %p248 = por %p246, %p247
      %p250 = scmp.ne.s32.totalorder %s235, %s249
      %p251 = scmp.eq.s32.totalorder %s31, 0
      %p252 = por %p250, %p251
      %s254 = sadd.s32 %s253, 1
      %p257 = scmp.eq.s32.totalorder %s25, 1
      %p258 = scmp.ne.s32.totalorder %s253, %s255
      %p259 = scmp.eq.s32.totalorder %s25, 0
      %p260 = por %p258, %p259
      %p261 = scmp.ne.s32.totalorder %s253, %s255
      %p262 = scmp.eq.s32.totalorder %s30, 1
      %p263 = por %p261, %p262
      %p264 = scmp.ne.s32.totalorder %s255, %s256
      %p265 = scmp.eq.s32.totalorder %s30, 0
      %p266 = por %p264, %p265
      %p267 = scmp.ne.s32.totalorder %s255, %s256
      %p268 = scmp.eq.s32.totalorder %s31, 1
      %p269 = por %p267, %p268
      %p271 = scmp.ne.s32.totalorder %s256, %s270
      %p272 = scmp.eq.s32.totalorder %s31, 0
      %p273 = por %p271, %p272
      %s275 = sadd.s32 %s274, 1
      %p278 = scmp.eq.s32.totalorder %s25, 1
      %p279 = scmp.ne.s32.totalorder %s274, %s276
      %p280 = scmp.eq.s32.totalorder %s25, 0
      %p281 = por %p279, %p280
      %p282 = scmp.ne.s32.totalorder %s274, %s276
      %p283 = scmp.eq.s32.totalorder %s30, 1
      %p284 = por %p282, %p283
      %p285 = scmp.ne.s32.totalorder %s276, %s277
      %p286 = scmp.eq.s32.totalorder %s30, 0
      %p287 = por %p285, %p286
      %p288 = scmp.ne.s32.totalorder %s276, %s277
      %p289 = scmp.eq.s32.totalorder %s31, 1
      %p290 = por %p288, %p289
      %p292 = scmp.ne.s32.totalorder %s277, %s291
      %p293 = scmp.eq.s32.totalorder %s31, 0
      %p294 = por %p292, %p293
      %s296 = sadd.s32 %s295, 1
      %p299 = scmp.eq.s32.totalorder %s25, 1
      %p300 = scmp.ne.s32.totalorder %s295, %s297
      %p301 = scmp.eq.s32.totalorder %s25, 0
      %p302 = por %p300, %p301
      %p303 = scmp.ne.s32.totalorder %s295, %s297
      %p304 = scmp.eq.s32.totalorder %s30, 1
      %p305 = por %p303, %p304
      %p306 = scmp.ne.s32.totalorder %s297, %s298
      %p307 = scmp.eq.s32.totalorder %s30, 0
      %p308 = por %p306, %p307
      %p309 = scmp.ne.s32.totalorder %s297, %s298
      %p310 = scmp.eq.s32.totalorder %s31, 1
      %p311 = por %p309, %p310
      %p313 = scmp.ne.s32.totalorder %s298, %s312
      %p314 = scmp.eq.s32.totalorder %s31, 0
      %p315 = por %p313, %p314
      %s317 = sadd.s32 %s316, 1
      %p320 = scmp.eq.s32.totalorder %s25, 1
      %p321 = scmp.ne.s32.totalorder %s316, %s318
      %p322 = scmp.eq.s32.totalorder %s25, 0
      %p323 = por %p321, %p322
      %p324 = scmp.ne.s32.totalorder %s316, %s318
      %p325 = scmp.eq.s32.totalorder %s30, 1
      %p326 = por %p324, %p325
      %p327 = scmp.ne.s32.totalorder %s318, %s319
      %p328 = scmp.eq.s32.totalorder %s30, 0
      %p329 = por %p327, %p328
      %p330 = scmp.ne.s32.totalorder %s318, %s319
      %p331 = scmp.eq.s32.totalorder %s31, 1
      %p332 = por %p330, %p331
      %p334 = scmp.ne.s32.totalorder %s319, %s333
      %p335 = scmp.eq.s32.totalorder %s31, 0
      %p336 = por %p334, %p335
      %s338 = sadd.s32 %s337, 1
      %p341 = scmp.eq.s32.totalorder %s25, 1
      %p342 = scmp.ne.s32.totalorder %s337, %s339
      %p343 = scmp.eq.s32.totalorder %s25, 0
      %p344 = por %p342, %p343
      %p345 = scmp.ne.s32.totalorder %s337, %s339
      %p346 = scmp.eq.s32.totalorder %s30, 1
      %p347 = por %p345, %p346
      %p348 = scmp.ne.s32.totalorder %s339, %s340
      %p349 = scmp.eq.s32.totalorder %s30, 0
      %p350 = por %p348, %p349
      %p351 = scmp.ne.s32.totalorder %s339, %s340
      %p352 = scmp.eq.s32.totalorder %s31, 1
      %p353 = por %p351, %p352
      %p355 = scmp.ne.s32.totalorder %s340, %s354
      %p356 = scmp.eq.s32.totalorder %s31, 0
      %p357 = por %p355, %p356
      %s359 = sadd.s32 %s358, 1
      %p362 = scmp.eq.s32.totalorder %s25, 1
      %p363 = scmp.ne.s32.totalorder %s358, %s360
      %p364 = scmp.eq.s32.totalorder %s25, 0
      %p365 = por %p363, %p364
      %p366 = scmp.ne.s32.totalorder %s358, %s360
      %p367 = scmp.eq.s32.totalorder %s30, 1
      %p368 = por %p366, %p367
      %p369 = scmp.ne.s32.totalorder %s360, %s361
      %p370 = scmp.eq.s32.totalorder %s30, 0
      %p371 = por %p369, %p370
      %p372 = scmp.ne.s32.totalorder %s360, %s361
      %p373 = scmp.eq.s32.totalorder %s31, 1
      %p374 = por %p372, %p373
      %p376 = scmp.ne.s32.totalorder %s361, %s375
      %p377 = scmp.eq.s32.totalorder %s31, 0
      %p378 = por %p376, %p377
      %s379 = ssub.s32 %s25, %s32
      %p380 = scmp.eq.s32.totalorder %s379, 0
      %s382 = sadd.s32 %s381, 1
      %s383 = scalar_select %p380, %s381, %s382
      %p386 = pneg %p380
      %p387 = scmp.eq.s32.totalorder %s25, 1
      %p388 = por %p386, %p387
      %p389 = scmp.ne.s32.totalorder %s381, %s384
      %p390 = scmp.eq.s32.totalorder %s25, 0
      %p391 = por %p389, %p390
      %p392 = scmp.ne.s32.totalorder %s381, %s384
      %p393 = scmp.eq.s32.totalorder %s30, 1
      %p394 = por %p392, %p393
      %p395 = scmp.ne.s32.totalorder %s384, %s385
      %p396 = scmp.eq.s32.totalorder %s30, 0
      %p397 = por %p395, %p396
      %p398 = scmp.ne.s32.totalorder %s384, %s385
      %p399 = scmp.eq.s32.totalorder %s31, 1
      %p400 = por %p398, %p399
      %p402 = scmp.ne.s32.totalorder %s385, %s401
      %p403 = scmp.eq.s32.totalorder %s31, 0
      %p404 = por %p402, %p403
      %p405 = scmp.le.s32.totalorder 1, %s25
      %p406 = scmp.lt.s32.totalorder %s25, 3
      %p407 = pnand %p405, %p406
      %p408 = pneg %p407
      // Predicated region
      $region9: #{tpu_custom_call.1} parent=5 // pred_check
        _
      $region10: #{tpu_custom_call.1} parent=5 // pred_check_branch
        %410 = sbr.rel (%p407) target = $region12
      $region11: #{tpu_custom_call.1} parent=5 // pred_region
        %s411 = ssub.s32 %s25, 1
        // Predicated region
        $region13: #{tpu_custom_call.1} parent=11 // pred_check
          %p412 = pneg %p46
        $region14: #{tpu_custom_call.1} parent=11 // pred_check_branch
          %414 = sbr.rel (%p412) target = $region16
        $region15: #{tpu_custom_call.1} parent=11 // pred_region
          _
        $region16: #{tpu_custom_call.1} parent=11 // pred_fallthru
          _
        // Predicated region
        $region17: #{tpu_custom_call.1} parent=11 // pred_check
          %p415 = pneg %p119
        $region18: #{tpu_custom_call.1} parent=11 // pred_check_branch
          %417 = sbr.rel (%p415) target = $region20
        $region19: #{tpu_custom_call.1} parent=11 // pred_region
          _
        $region20: #{tpu_custom_call.1} parent=11 // pred_fallthru
          _
        // Predicated region
        $region21: #{tpu_custom_call.1} parent=11 // pred_check
          %p418 = pneg %p140
        $region22: #{tpu_custom_call.1} parent=11 // pred_check_branch
          %420 = sbr.rel (%p418) target = $region24
        $region23: #{tpu_custom_call.1} parent=11 // pred_region
          _
        $region24: #{tpu_custom_call.1} parent=11 // pred_fallthru
          _
        // Predicated region
        $region25: #{tpu_custom_call.1} parent=11 // pred_check
          %p421 = pneg %p161
        $region26: #{tpu_custom_call.1} parent=11 // pred_check_branch
          %423 = sbr.rel (%p421) target = $region28
        $region27: #{tpu_custom_call.1} parent=11 // pred_region
          _
        $region28: #{tpu_custom_call.1} parent=11 // pred_fallthru
          _
        // Predicated region
        $region29: #{tpu_custom_call.1} parent=11 // pred_check
          %p424 = pneg %p182
        $region30: #{tpu_custom_call.1} parent=11 // pred_check_branch
          %426 = sbr.rel (%p424) target = $region32
        $region31: #{tpu_custom_call.1} parent=11 // pred_region
          _
        $region32: #{tpu_custom_call.1} parent=11 // pred_fallthru
          _
        // Predicated region
        $region33: #{tpu_custom_call.1} parent=11 // pred_check
          %p427 = pneg %p203
        $region34: #{tpu_custom_call.1} parent=11 // pred_check_branch
          %429 = sbr.rel (%p427) target = $region36
        $region35: #{tpu_custom_call.1} parent=11 // pred_region
          _
        $region36: #{tpu_custom_call.1} parent=11 // pred_fallthru
          _
        // Predicated region
        $region37: #{tpu_custom_call.1} parent=11 // pred_check
          %p430 = pneg %p224
        $region38: #{tpu_custom_call.1} parent=11 // pred_check_branch
          %432 = sbr.rel (%p430) target = $region40
        $region39: #{tpu_custom_call.1} parent=11 // pred_region
          _
        $region40: #{tpu_custom_call.1} parent=11 // pred_fallthru
          _
        // Predicated region
        $region41: #{tpu_custom_call.1} parent=11 // pred_check
          %p433 = pneg %p245
        $region42: #{tpu_custom_call.1} parent=11 // pred_check_branch
          %435 = sbr.rel (%p433) target = $region44
        $region43: #{tpu_custom_call.1} parent=11 // pred_region
          _
        $region44: #{tpu_custom_call.1} parent=11 // pred_fallthru
          _
        // Predicated region
        $region45: #{tpu_custom_call.1} parent=11 // pred_check
          %p436 = pneg %p266
        $region46: #{tpu_custom_call.1} parent=11 // pred_check_branch
          %438 = sbr.rel (%p436) target = $region48
        $region47: #{tpu_custom_call.1} parent=11 // pred_region
          _
        $region48: #{tpu_custom_call.1} parent=11 // pred_fallthru
          _
        // Predicated region
        $region49: #{tpu_custom_call.1} parent=11 // pred_check
          %p439 = pneg %p287
        $region50: #{tpu_custom_call.1} parent=11 // pred_check_branch
          %441 = sbr.rel (%p439) target = $region52
        $region51: #{tpu_custom_call.1} parent=11 // pred_region
          _
        $region52: #{tpu_custom_call.1} parent=11 // pred_fallthru
          _
        // Predicated region
        $region53: #{tpu_custom_call.1} parent=11 // pred_check
          %p442 = pneg %p308
        $region54: #{tpu_custom_call.1} parent=11 // pred_check_branch
          %444 = sbr.rel (%p442) target = $region56
        $region55: #{tpu_custom_call.1} parent=11 // pred_region
          _
        $region56: #{tpu_custom_call.1} parent=11 // pred_fallthru
          _
        // Predicated region
        $region57: #{tpu_custom_call.1} parent=11 // pred_check
          %p445 = pneg %p329
        $region58: #{tpu_custom_call.1} parent=11 // pred_check_branch
          %447 = sbr.rel (%p445) target = $region60
        $region59: #{tpu_custom_call.1} parent=11 // pred_region
          _
        $region60: #{tpu_custom_call.1} parent=11 // pred_fallthru
          _
        // Predicated region
        $region61: #{tpu_custom_call.1} parent=11 // pred_check
          %p448 = pneg %p350
        $region62: #{tpu_custom_call.1} parent=11 // pred_check_branch
          %450 = sbr.rel (%p448) target = $region64
        $region63: #{tpu_custom_call.1} parent=11 // pred_region
          _
        $region64: #{tpu_custom_call.1} parent=11 // pred_fallthru
          _
        // Predicated region
        $region65: #{tpu_custom_call.1} parent=11 // pred_check
          %p451 = pneg %p371
        $region66: #{tpu_custom_call.1} parent=11 // pred_check_branch
          %453 = sbr.rel (%p451) target = $region68
        $region67: #{tpu_custom_call.1} parent=11 // pred_region
          _
        $region68: #{tpu_custom_call.1} parent=11 // pred_fallthru
          _
      $region12: #{tpu_custom_call.1} parent=5 // pred_fallthru
        _
      %p454 = scmp.lt.s32.totalorder %s25, 2
      // Predicated region
      $region69: #{tpu_custom_call.1} parent=5 // pred_check
        %p455 = pneg %p454
      $region70: #{tpu_custom_call.1} parent=5 // pred_check_branch
        %457 = sbr.rel (%p455) target = $region72
      $region71: #{tpu_custom_call.1} parent=5 // pred_region
        // Predicated region
        $region73: #{tpu_custom_call.1} parent=71 // pred_check
          %p458 = pneg %p66
        $region74: #{tpu_custom_call.1} parent=71 // pred_check_branch
          %460 = sbr.rel (%p458) target = $region76
        $region75: #{tpu_custom_call.1} parent=71 // pred_region
          %p461 = scmp.lt.s32.totalorder %s25, 1
          %s462 = scalar_select %p461, %s25, 1
          %s463 = smul.addr %s462, 8
          %s464 = smul.addr %s463, 8
          %s465 = scalar_lea.vmem %s1, %s464
        $region76: #{tpu_custom_call.1} parent=71 // pred_fallthru
          _
        // Predicated region
        $region77: #{tpu_custom_call.1} parent=71 // pred_check
          %p466 = pneg %p92
        $region78: #{tpu_custom_call.1} parent=71 // pred_check_branch
          %468 = sbr.rel (%p466) target = $region80
        $region79: #{tpu_custom_call.1} parent=71 // pred_region
          %p469 = scmp.lt.s32.totalorder %s25, 1
          %s470 = scalar_select %p469, %s25, 1
          %s471 = smul.addr %s470, 8
          %s472 = scalar_lea.vmem %s2, %s471
        $region80: #{tpu_custom_call.1} parent=71 // pred_fallthru
          _
      $region72: #{tpu_custom_call.1} parent=5 // pred_fallthru
        _
      %p473 = scmp.le.s32.totalorder 1, %s25
      %p474 = scmp.lt.s32.totalorder %s25, 3
      %p475 = pnand %p473, %p474
      %p476 = pneg %p475
      // Predicated region
      $region81: #{tpu_custom_call.1} parent=5 // pred_check
        _
      $region82: #{tpu_custom_call.1} parent=5 // pred_check_branch
        %478 = sbr.rel (%p475) target = $region84
      $region83: #{tpu_custom_call.1} parent=5 // pred_region
        %s479 = ssub.s32 %s25, 1
        %p480 = pneg %p46
        %p481 = pneg %p43
        %p482 = scmp.lt.s32.totalorder %s30, 1
        %s483 = scalar_select %p482, %s30, 1
        %s484 = smul.addr %s483, 8
        %s485 = smul.addr %s484, 8
        %s486 = scalar_lea.vmem %s1, %s485
        %p487 = pneg %p72
        %p488 = pneg %p69
        %p489 = scmp.lt.s32.totalorder %s30, 1
        %s490 = scalar_select %p489, %s30, 1
        %s491 = smul.addr %s490, 8
        %s492 = scalar_lea.vmem %s2, %s491
        %p493 = pneg %p98
        %p494 = pneg %p95
        %p495 = pneg %p119
        %p496 = pneg %p116
        %p497 = pneg %p140
        %p498 = pneg %p137
        %p499 = pneg %p161
        %p500 = pneg %p158
        %p501 = pneg %p182
        %p502 = pneg %p179
        %p503 = pneg %p203
        %p504 = pneg %p200
        %p505 = pneg %p224
        %p506 = pneg %p221
        %p507 = pneg %p245
        %p508 = pneg %p242
        %p509 = pneg %p266
        %p510 = pneg %p263
        %p511 = pneg %p287
        %p512 = pneg %p284
        %p513 = pneg %p308
        %p514 = pneg %p305
        %p515 = pneg %p329
        %p516 = pneg %p326
        %p517 = pneg %p350
        %p518 = pneg %p347
        %p519 = pneg %p371
        %p520 = pneg %p368
        %p521 = pneg %p397
        %p522 = pneg %p394
        %s523 = sand.u32 %s384, 1
        %s524 = scalar_lea.sflag [#allocation3], %s523
        %s525 = sand.u32 %s384, 1
        %s526 = smul.addr %s525, 8
        %s527 = scalar_lea.vmem [#allocation2], %s526
        %p528 = scmp.lt.s32.totalorder %s30, 1
        %s529 = scalar_select %p528, %s30, 1
        %s530 = smul.addr %s529, 8
        %s531 = smul.addr %s530, 8
        %s532 = scalar_lea.vmem %s1, %s531
        %p533 = scmp.lt.s32.totalorder %s30, 1
        %s534 = scalar_select %p533, %s30, 1
        %s535 = smul.addr %s534, 8
        %s536 = scalar_lea.vmem %s2, %s535
        %v537 = vld [vmem:[%s532] sm:$0xff]
        %v538 = vld [vmem:[%s532 + $0x8] sm:$0xff]
        %v539 = vld [vmem:[%s532 + $0x10] sm:$0xff]
        %v540 = vld [vmem:[%s532 + $0x18] sm:$0xff]
        %v541 = vld [vmem:[%s532 + $0x20] sm:$0xff]
        %v542 = vld [vmem:[%s532 + $0x28] sm:$0xff]
        %v543 = vld [vmem:[%s532 + $0x30] sm:$0xff]
        %v544 = vld [vmem:[%s532 + $0x38] sm:$0xff]
        %v545 = vld [vmem:[%s3] sm:$0xff]
        %v546 = vld [vmem:[%s3 + $0x8] sm:$0xff]
        %v547 = vld [vmem:[%s3 + $0x10] sm:$0xff]
        %v548 = vld [vmem:[%s3 + $0x18] sm:$0xff]
        %v549 = vld [vmem:[%s3 + $0x20] sm:$0xff]
        %v550 = vld [vmem:[%s3 + $0x28] sm:$0xff]
        %v551 = vld [vmem:[%s3 + $0x30] sm:$0xff]
        %v552 = vld [vmem:[%s3 + $0x38] sm:$0xff]
        %v553 = vld [vmem:[%s536] sm:$0xff]
        %v554 = vld [vmem:[%s4] sm:$0xff]
        %555 = vxpose.xlu0.b32.start [1/16] %v553, 128
        %556 = vxpose.xlu0.b32.cont [2/16] 0.0, 128
        %557 = vxpose.xlu0.b32.cont [3/16] 0.0, 128
        %558 = vxpose.xlu0.b32.cont [4/16] 0.0, 128
        %559 = vxpose.xlu0.b32.cont [5/16] 0.0, 128
        %560 = vxpose.xlu0.b32.cont [6/16] 0.0, 128
        %561 = vxpose.xlu0.b32.cont [7/16] 0.0, 128
        %562 = vxpose.xlu0.b32.cont [8/16] 0.0, 128
        %563 = vxpose.xlu0.b32.cont [9/16] 0.0, 128
        %564 = vxpose.xlu0.b32.cont [10/16] 0.0, 128
        %565 = vxpose.xlu0.b32.cont [11/16] 0.0, 128
        %566 = vxpose.xlu0.b32.cont [12/16] 0.0, 128
        %567 = vxpose.xlu0.b32.cont [13/16] 0.0, 128
        %568 = vxpose.xlu0.b32.cont [14/16] 0.0, 128
        %569 = vxpose.xlu0.b32.cont [15/16] 0.0, 128
        %570 = vxpose.xlu0.b32.end [16/16] 0.0, 128
        %v571 = vpop.trf.xlu0
        %v572 = vpop.trf.xlu0
        %v573 = vpop.trf.xlu0
        %v574 = vpop.trf.xlu0
        %v575 = vpop.trf.xlu0
        %v576 = vpop.trf.xlu0
        %v577 = vpop.trf.xlu0
        %v578 = vpop.trf.xlu0
        %v579 = vpop.trf.xlu0
        %v580 = vpop.trf.xlu0
        %v581 = vpop.trf.xlu0
        %v582 = vpop.trf.xlu0
        %v583 = vpop.trf.xlu0
        %v584 = vpop.trf.xlu0
        %v585 = vpop.trf.xlu0
        %v586 = vpop.trf.xlu0
        %vm587 = vcmask 64512
        %v589 = vsel %vm587, %v571, 0
        %v592 = vsel %vm587, %v572, 0
        %594 = vmatpush.msra.mxu0 0.0
        %595 = vmatpush.msra.mxu0 0.0
        %596 = vmatpush.msra.mxu0 0.0
        %597 = vmatpush.msra.mxu0 0.0
        %598 = vmatpush.msra.mxu0 0.0
        %599 = vmatpush.msra.mxu0 0.0
        %600 = vmatpush.msra.mxu0 0.0
        %601 = vmatpush.msra.mxu0 0.0
        %602 = vmatpush.msra.mxu0 0.0
        %603 = vmatpush.msra.mxu0 0.0
        %604 = vmatpush.msra.mxu0 0.0
        %605 = vmatpush.msra.mxu0 0.0
        %606 = vmatpush.msra.mxu0 0.0
        %607 = vmatpush.msra.mxu0 0.0
        %608 = vmatpush.msra.mxu0 0.0
        %609 = vmatpush.msra.mxu0 %v554
        %610 = vmatmul.f32.gmra.mxu0 %v589
        %v611 = vpop.f32.mrf.mxu0
        %v612 = vadd.f32 0.0, %v611
        %613 = vmatmul.f32.gmra.mxu0 %v592
        %v614 = vpop.f32.mrf.mxu0
        %v615 = vadd.f32 0.0, %v614
        %616 = vdwg.mxu0
        %617 = vxpose.xlu0.b32.start [1/16] %v537, 128
        %618 = vxpose.xlu0.b32.cont [2/16] %v538, 128
        %619 = vxpose.xlu0.b32.cont [3/16] %v539, 128
        %620 = vxpose.xlu0.b32.cont [4/16] %v540, 128
        %621 = vxpose.xlu0.b32.cont [5/16] %v541, 128
        %622 = vxpose.xlu0.b32.cont [6/16] %v542, 128
        %623 = vxpose.xlu0.b32.cont [7/16] %v543, 128
        %624 = vxpose.xlu0.b32.cont [8/16] %v544, 128
        %625 = vxpose.xlu0.b32.cont [9/16] 0.0, 128
        %626 = vxpose.xlu0.b32.cont [10/16] 0.0, 128
        %627 = vxpose.xlu0.b32.cont [11/16] 0.0, 128
        %628 = vxpose.xlu0.b32.cont [12/16] 0.0, 128
        %629 = vxpose.xlu0.b32.cont [13/16] 0.0, 128
        %630 = vxpose.xlu0.b32.cont [14/16] 0.0, 128
        %631 = vxpose.xlu0.b32.cont [15/16] 0.0, 128
        %632 = vxpose.xlu0.b32.end [16/16] 0.0, 128
        %v633 = vpop.trf.xlu0
        %v634 = vpop.trf.xlu0
        %v635 = vpop.trf.xlu0
        %v636 = vpop.trf.xlu0
        %v637 = vpop.trf.xlu0
        %v638 = vpop.trf.xlu0
        %v639 = vpop.trf.xlu0
        %v640 = vpop.trf.xlu0
        %v641 = vpop.trf.xlu0
        %v642 = vpop.trf.xlu0
        %v643 = vpop.trf.xlu0
        %v644 = vpop.trf.xlu0
        %v645 = vpop.trf.xlu0
        %v646 = vpop.trf.xlu0
        %v647 = vpop.trf.xlu0
        %v648 = vpop.trf.xlu0
        %vm649 = vcmask 523264
        %v651 = vsel %vm649, %v633, 0
        %v654 = vsel %vm649, %v634, 0
        %656 = vmatpush.msra.mxu0 0.0
        %657 = vmatpush.msra.mxu0 0.0
        %658 = vmatpush.msra.mxu0 0.0
        %659 = vmatpush.msra.mxu0 0.0
        %660 = vmatpush.msra.mxu0 0.0
        %661 = vmatpush.msra.mxu0 0.0
        %662 = vmatpush.msra.mxu0 0.0
        %663 = vmatpush.msra.mxu0 0.0
        %664 = vmatpush.msra.mxu0 %v552
        %665 = vmatpush.msra.mxu0 %v551
        %666 = vmatpush.msra.mxu0 %v550
        %667 = vmatpush.msra.mxu0 %v549
        %668 = vmatpush.msra.mxu0 %v548
        %669 = vmatpush.msra.mxu0 %v547
        %670 = vmatpush.msra.mxu0 %v546
        %671 = vmatpush.msra.mxu0 %v545
        %672 = vmatmul.f32.gmra.mxu0 %v651
        %v673 = vpop.f32.mrf.mxu0
        %v674 = vadd.f32 %v612, %v673
        %675 = vmatmul.f32.gmra.mxu0 %v654
        %v676 = vpop.f32.mrf.mxu0
        %v677 = vadd.f32 %v615, %v676
        %678 = vdwg.mxu0
        %v679 = vld [vmem:[%s5] sm:$0x1]
        %v681 = vperm.slane %v679, 0
        %v683 = vadd.f32 %v674, %v681
        %v684 = vadd.f32 %v677, %v681
        %v685 = vld [vmem:[%s0] sm:$0x1]
        %v687 = vperm.slane %v685, 0
        %v689 = vadd.f32 %v683, %v687
        %v690 = vadd.f32 %v684, %v687
        %vm693 = vcmask 1040384
        %v694 = vrot.slane %v689, 7
        %v695 = vrot.slane %v690, 7
        %v696 = vsel %vm693, %v694, %v695
        %v700 = vsel %vm693, 0.0, %v694
        %v701 = vsel %vm693, %v695, 0.0
        %vm704 = vcmask 1046528
        %v705 = vrot.slane %v700, 1
        %v706 = vrot.slane %v696, 1
        %v707 = vsel %vm704, %v705, %v706
        %v708 = vrot.slane %v701, 1
        %v709 = vsel %vm704, %v706, %v708
        %710 = vrot.lane.b32.xlu0 %v707, 32
        %v711 = vpop.permute.xlu0 %710
        %712 = vrot.lane.b32.xlu0 %v709, 32
        %v713 = vpop.permute.xlu0 %712
        %vm716 = vcmask 1045504
        %v717 = vrot.slane %v700, 2
        %v718 = vrot.slane %v696, 2
        %v719 = vsel %vm716, %v717, %v718
        %v720 = vrot.slane %v701, 2
        %v721 = vsel %vm716, %v718, %v720
        %722 = vrot.lane.b32.xlu0 %v719, 64
        %v723 = vpop.permute.xlu0 %722
        %724 = vrot.lane.b32.xlu0 %v721, 64
        %v725 = vpop.permute.xlu0 %724
        %vm728 = vcmask 261120
        %v729 = vsel %vm728, %v700, %v711
        %v730 = vsel %vm728, %v696, %v713
        %v731 = vsel %vm649, %v729, %v723
        %v732 = vsel %vm649, %v730, %v725
        %v733 = vld [vmem:[%s6] sm:$0xff]
        %v734 = vld [vmem:[%s6 + $0x8] sm:$0xff]
        %v735 = vld [vmem:[%s6 + $0x10] sm:$0xff]
        %v736 = vld [vmem:[%s6 + $0x18] sm:$0xff]
        %v737 = vld [vmem:[%s6 + $0x20] sm:$0xff]
        %v738 = vld [vmem:[%s6 + $0x28] sm:$0xff]
        %v739 = vld [vmem:[%s6 + $0x30] sm:$0xff]
        %v740 = vld [vmem:[%s6 + $0x38] sm:$0xff]
        %v741 = vld [vmem:[%s6 + $0x40] sm:$0xff]
        %v742 = vld [vmem:[%s6 + $0x48] sm:$0xff]
        %v743 = vld [vmem:[%s6 + $0x50] sm:$0xff]
        %v744 = vld [vmem:[%s6 + $0x58] sm:$0xff]
        %v745 = vld [vmem:[%s7] sm:$0x1]
        %v747 = vperm.slane %v745, 0
        %vm749 = vcmask 785408
        %v751 = vsel %vm749, %v731, 0
        %v754 = vsel %vm749, %v732, 0
        %756 = vmatpush.msra.mxu0 0.0
        %757 = vmatpush.msra.mxu0 0.0
        %758 = vmatpush.msra.mxu0 0.0
        %759 = vmatpush.msra.mxu0 0.0
        %760 = vmatpush.msra.mxu0 %v744
        %761 = vmatpush.msra.mxu0 %v743
        %762 = vmatpush.msra.mxu0 %v742
        %763 = vmatpush.msra.mxu0 %v741
        %764 = vmatpush.msra.mxu0 %v740
        %765 = vmatpush.msra.mxu0 %v739
        %766 = vmatpush.msra.mxu0 %v738
        %767 = vmatpush.msra.mxu0 %v737
        %768 = vmatpush.msra.mxu0 %v736
        %769 = vmatpush.msra.mxu0 %v735
        %770 = vmatpush.msra.mxu0 %v734
        %771 = vmatpush.msra.mxu0 %v733
        %772 = vmatmul.f32.gmra.mxu0 %v751
        %v773 = vpop.f32.mrf.mxu0
        %v774 = vadd.f32 %v747, %v773
        %775 = vmatmul.f32.gmra.mxu0 %v754
        %v776 = vpop.f32.mrf.mxu0
        %v777 = vadd.f32 %v747, %v776
        %778 = vdwg.mxu0
        %v779 = vld [vmem:[%s8] sm:$0xff]
        %v780 = vld [vmem:[%s8 + $0x8] sm:$0xff]
        %v781 = vld [vmem:[%s8 + $0x10] sm:$0xff]
        %v782 = vld [vmem:[%s8 + $0x18] sm:$0xff]
        %v783 = vld [vmem:[%s9] sm:$0x1]
        %v785 = vperm.slane %v783, 0
        %v787 = vsel %vm728, %v689, 0
        %v789 = vsel %vm728, %v690, 0
        %791 = vmatpush.msra.mxu0 0.0
        %792 = vmatpush.msra.mxu0 0.0
        %793 = vmatpush.msra.mxu0 0.0
        %794 = vmatpush.msra.mxu0 0.0
        %795 = vmatpush.msra.mxu0 0.0
        %796 = vmatpush.msra.mxu0 0.0
        %797 = vmatpush.msra.mxu0 0.0
        %798 = vmatpush.msra.mxu0 0.0
        %799 = vmatpush.msra.mxu0 0.0
        %800 = vmatpush.msra.mxu0 0.0
        %801 = vmatpush.msra.mxu0 0.0
        %802 = vmatpush.msra.mxu0 0.0
        %803 = vmatpush.msra.mxu0 %v782
        %804 = vmatpush.msra.mxu0 %v781
        %805 = vmatpush.msra.mxu0 %v780
        %806 = vmatpush.msra.mxu0 %v779
        %807 = vmatmul.f32.gmra.mxu0 %v787
        %v808 = vpop.f32.mrf.mxu0
        %v809 = vadd.f32 %v785, %v808
        %810 = vmatmul.f32.gmra.mxu0 %v789
        %v811 = vpop.f32.mrf.mxu0
        %v812 = vadd.f32 %v785, %v811
        %813 = vdwg.mxu0
        %v816 = vrot.slane %v809, 7
        %v817 = vrot.slane %v812, 7
        %v818 = vsel %vm693, %v816, %v817
        %819 = vrot.lane.b32.xlu0 %v816, 96
        %v820 = vpop.permute.xlu0 %819
        %821 = vrot.lane.b32.xlu0 %v818, 96
        %v822 = vpop.permute.xlu0 %821
        %823 = vrot.lane.b32.xlu0 %v817, 96
        %v824 = vpop.permute.xlu0 %823
        %v828 = vsel %vm693, 0.0, %v820
        %v829 = vsel %vm693, %v824, 0.0
        %830 = vrot.lane.b32.xlu0 %v816, 64
        %v831 = vpop.permute.xlu0 %830
        %832 = vrot.lane.b32.xlu0 %v818, 64
        %v833 = vpop.permute.xlu0 %832
        %834 = vrot.lane.b32.xlu0 %v817, 64
        %v835 = vpop.permute.xlu0 %834
        %v839 = vsel %vm693, 0.0, %v831
        %v840 = vsel %vm693, %v835, 0.0
        %v841 = vmul.f32 %v809, %v828
        %v842 = vmul.f32 %v812, %v822
        %v843 = vsel %vm728, %v841, 0.0
        %844 = vadd.xlane.f32.xlu0 %v843
        %v845 = vpop.xlane.xlu0 %844
        %v846 = vsel %vm728, %v842, 0.0
        %847 = vadd.xlane.f32.xlu0 %v846
        %v848 = vpop.xlane.xlu0 %847
        %v851 = vrot.slane %v828, 1
        %v852 = vrot.slane %v822, 1
        %v853 = vsel %vm704, %v851, %v852
        %v854 = vrot.slane %v829, 1
        %v855 = vsel %vm704, %v852, %v854
        %v858 = vmul.f32 %v809, %v853
        %v859 = vmul.f32 %v812, %v855
        %v860 = vsel %vm728, %v858, 0.0
        %861 = vadd.xlane.f32.xlu0 %v860
        %v862 = vpop.xlane.xlu0 %861
        %v863 = vsel %vm728, %v859, 0.0
        %864 = vadd.xlane.f32.xlu0 %v863
        %v865 = vpop.xlane.xlu0 %864
        %v866 = vrot.slane %v828, 2
        %v867 = vrot.slane %v822, 2
        %v868 = vsel %vm716, %v866, %v867
        %v869 = vrot.slane %v829, 2
        %v870 = vsel %vm716, %v867, %v869
        %v873 = vmul.f32 %v809, %v868
        %v874 = vmul.f32 %v812, %v870
        %v875 = vsel %vm728, %v873, 0.0
        %876 = vadd.xlane.f32.xlu0 %v875
        %v877 = vpop.xlane.xlu0 %876
        %v878 = vsel %vm728, %v874, 0.0
        %879 = vadd.xlane.f32.xlu0 %v878
        %v880 = vpop.xlane.xlu0 %879
        %vm881 = vcmask 7168
        %v882 = vsel %vm881, %v845, %v862
        %v883 = vsel %vm881, %v848, %v865
        %vm884 = vcmask 15360
        %v885 = vsel %vm884, %v882, %v877
        %v886 = vsel %vm884, %v883, %v880
        %v887 = vmul.f32 %v885, 0.17677669
        %v888 = vmul.f32 %v886, 0.17677669
        %v889 = vlaneseq
        %v890 = vshrl.u32 %v889, 7
        %v891 = vadd.s32 %v890, 8
        %v892 = vlaneseq
        %v893 = vand.u32 %v892, 127
        %v894 = vadd.s32 %v890, %v893
        %v895 = vadd.s32 %v891, %v893
        %vm896 = vcmp.ge.s32.totalorder %v894, 1
        %vm897 = vcmp.ge.s32.totalorder %v895, 1
        %vm898 = vcmp.lt.s32.totalorder %v894, 17
        %vm899 = vcmp.lt.s32.totalorder %v895, 17
        %vm900 = vmand %vm896, %vm898
        %vm901 = vmand %vm897, %vm899
        %v902 = vsel %vm900, 9.999995e-07, -13.815511
        %v903 = vsel %vm901, 9.999995e-07, -13.815511
        %v904 = vadd.f32 %v887, %v902
        %v905 = vadd.f32 %v888, %v903
        %vm906 = vcmask 23552
        %v907 = vsel %vm906, %v904, -inf
        %908 = vmax.xlane.f32.xlu0 %v907
        %v909 = vpop.xlane.xlu0 %908
        %v910 = vsel %vm906, %v905, -inf
        %911 = vmax.xlane.f32.xlu0 %v910
        %v912 = vpop.xlane.xlu0 %911
        %v913 = vsub.f32 %v904, %v909
        %v914 = vsub.f32 %v905, %v912
        %v915 = vmul.f32 %v913, 1.442695
        %v916 = vpow.pop %v915
        %v917 = vmul.f32 %v914, 1.442695
        %v918 = vpow.pop %v917
        %v919 = vsel %vm906, %v916, 0.0
        %920 = vadd.xlane.f32.xlu0 %v919
        %v921 = vpop.xlane.xlu0 %920
        %v922 = vsel %vm906, %v918, 0.0
        %923 = vadd.xlane.f32.xlu0 %v922
        %v924 = vpop.xlane.xlu0 %923
        %v925 = vrcp.pop %v921
        %v926 = vmul.f32 %v921, %v925
        %v927 = vsub.f32 1.0, %v926
        %v928 = vmul.f32 %v925, %v927
        %v929 = vadd.f32 %v925, %v928
        %vm930 = vweird.f32 %v921
        %vm931 = vweird.f32 %v925
        %vm932 = vmor %vm930, %vm931
        %v933 = vsel %vm932, %v925, %v929
        %v934 = vand.u32 2147483647, %v921
        %vm935 = vcmp.eq.f32.partialorder %v934, 8.507059e+37
        %v936 = vand.u32 %v921, 2147483648
        %v937 = vor.u32 1.1754944e-38, %v936
        %v938 = vsel %vm935, %v937, %v933
        %v939 = vmul.f32 %v916, %v938
        %v940 = vrcp.pop %v924
        %v941 = vmul.f32 %v924, %v940
        %v942 = vsub.f32 1.0, %v941
        %v943 = vmul.f32 %v940, %v942
        %v944 = vadd.f32 %v940, %v943
        %vm945 = vweird.f32 %v924
        %vm946 = vweird.f32 %v940
        %vm947 = vmor %vm945, %vm946
        %v948 = vsel %vm947, %v940, %v944
        %v949 = vand.u32 2147483647, %v924
        %vm950 = vcmp.eq.f32.partialorder %v949, 8.507059e+37
        %v951 = vand.u32 %v924, 2147483648
        %v952 = vor.u32 1.1754944e-38, %v951
        %v953 = vsel %vm950, %v952, %v948
        %v954 = vmul.f32 %v918, %v953
        %v955 = vsel %vm900, 1, 0
        %v956 = vsel %vm901, 1, 0
        %v957 = vcvt.s32.f32 %v955
        %v958 = vcvt.s32.f32 %v956
        %v959 = vmul.f32 %v939, %v957
        %v960 = vmul.f32 %v954, %v958
        %962 = vset.pattern.permute.xlu0 0
        %963 = vperm.xlu0 %962, %v959
        %v964 = vpop.permute.xlu0 %963
        %967 = vset.pattern.permute.xlu0 0
        %968 = vperm.xlu0 %967, %v960
        %v969 = vpop.permute.xlu0 %968
        %v971 = vmul.f32 %v964, %v839
        %v972 = vmul.f32 %v969, %v833
        %v973 = vadd.f32 %v971, 0.0
        %v974 = vadd.f32 %v972, 0.0
        %975 = vset.pattern.permute.xlu0 1
        %976 = vperm.xlu0 %975, %v959
        %v977 = vpop.permute.xlu0 %976
        %979 = vset.pattern.permute.xlu0 1
        %980 = vperm.xlu0 %979, %v960
        %v981 = vpop.permute.xlu0 %980
        %v985 = vrot.slane %v839, 1
        %v986 = vrot.slane %v833, 1
        %v987 = vsel %vm704, %v985, %v986
        %v988 = vrot.slane %v840, 1
        %v989 = vsel %vm704, %v986, %v988
        %v992 = vmul.f32 %v977, %v987
        %v993 = vmul.f32 %v981, %v989
        %v994 = vadd.f32 %v973, %v992
        %v995 = vadd.f32 %v974, %v993
        %996 = vset.pattern.permute.xlu0 2
        %997 = vperm.xlu0 %996, %v959
        %v998 = vpop.permute.xlu0 %997
        %1000 = vset.pattern.permute.xlu0 2
        %1001 = vperm.xlu0 %1000, %v960
        %v1002 = vpop.permute.xlu0 %1001
        %v1004 = vrot.slane %v839, 2
        %v1005 = vrot.slane %v833, 2
        %v1006 = vsel %vm716, %v1004, %v1005
        %v1007 = vrot.slane %v840, 2
        %v1008 = vsel %vm716, %v1005, %v1007
        %v1011 = vmul.f32 %v998, %v1006
        %v1012 = vmul.f32 %v1002, %v1008
        %v1013 = vadd.f32 %v994, %v1011
        %v1014 = vadd.f32 %v995, %v1012
        %v1015 = vadd.f32 %v774, %v1013
        %v1016 = vadd.f32 %v777, %v1014
        %v1017 = vsel %vm728, %v1015, 0.0
        %v1018 = vsel %vm728, %v1016, 0.0
        %v1019 = vadd.f32 %v1017, %v1018
        %v1020 = vrot.slane %v1019, 4
        %v1021 = vadd.f32 %v1019, %v1020
        %v1022 = vrot.slane %v1021, 2
        %v1023 = vadd.f32 %v1021, %v1022
        %v1024 = vrot.slane %v1023, 1
        %v1025 = vadd.f32 %v1023, %v1024
        %v1026 = vrcp.pop 16.0
        %v1027 = vmul.f32 16.0, %v1026
        %v1028 = vsub.f32 1.0, %v1027
        %v1029 = vmul.f32 %v1026, %v1028
        %v1030 = vadd.f32 %v1026, %v1029
        %vm1031 = vweird.f32 %v1026
        %v1032 = vsel %vm1031, %v1026, %v1030
        %v1033 = vmul.f32 %v1025, %v1032
        %v1034 = vmul.f32 %v1015, %v1015
        %v1035 = vmul.f32 %v1016, %v1016
        %v1036 = vsel %vm728, %v1034, 0.0
        %v1037 = vsel %vm728, %v1035, 0.0
        %v1038 = vadd.f32 %v1036, %v1037
        %v1039 = vrot.slane %v1038, 4
        %v1040 = vadd.f32 %v1038, %v1039
        %v1041 = vrot.slane %v1040, 2
        %v1042 = vadd.f32 %v1040, %v1041
        %v1043 = vrot.slane %v1042, 1
        %v1044 = vadd.f32 %v1042, %v1043
        %v1045 = vmul.f32 %v1044, %v1032
        %v1046 = vmul.f32 %v1033, %v1033
        %v1047 = vsub.f32 %v1045, %v1046
        %v1048 = vsub.f32 %v1015, %v1033
        %v1049 = vsub.f32 %v1016, %v1033
        %v1050 = vadd.f32 %v1047, 1e-05
        %v1051 = vrsqrt.pop %v1050
        %v1052 = vmul.f32 %v1051, %v1050
        %v1053 = vmul.f32 %v1052, %v1051
        %v1054 = vmul.f32 0.5, %v1053
        %v1055 = vsub.f32 1.5, %v1054
        %v1056 = vmul.f32 %v1051, %v1055
        %vm1057 = vweird.f32 %v1050
        %vm1058 = vweird.f32 %v1051
        %vm1059 = vmor %vm1057, %vm1058
        %v1060 = vsel %vm1059, %v1051, %v1056
        %v1061 = vmul.f32 %v1048, %v1060
        %v1062 = vmul.f32 %v1049, %v1060
        %v1063 = vld [vmem:[%s10] sm:$0xff]
        %v1064 = vld [vmem:[%s10 + $0x8] sm:$0xff]
        %v1065 = vld [vmem:[%s10 + $0x10] sm:$0xff]
        %v1066 = vld [vmem:[%s10 + $0x18] sm:$0xff]
        %v1067 = vld [vmem:[%s11] sm:$0x1]
        %v1069 = vperm.slane %v1067, 0
        %v1072 = vsel %vm728, %v1061, 0
        %v1075 = vsel %vm728, %v1062, 0
        %1077 = vmatpush.msra.mxu0 0.0
        %1078 = vmatpush.msra.mxu0 0.0
        %1079 = vmatpush.msra.mxu0 0.0
        %1080 = vmatpush.msra.mxu0 0.0
        %1081 = vmatpush.msra.mxu0 0.0
        %1082 = vmatpush.msra.mxu0 0.0
        %1083 = vmatpush.msra.mxu0 0.0
        %1084 = vmatpush.msra.mxu0 0.0
        %1085 = vmatpush.msra.mxu0 0.0
        %1086 = vmatpush.msra.mxu0 0.0
        %1087 = vmatpush.msra.mxu0 0.0
        %1088 = vmatpush.msra.mxu0 0.0
        %1089 = vmatpush.msra.mxu0 %v1066
        %1090 = vmatpush.msra.mxu0 %v1065
        %1091 = vmatpush.msra.mxu0 %v1064
        %1092 = vmatpush.msra.mxu0 %v1063
        %1093 = vmatmul.f32.gmra.mxu0 %v1072
        %v1094 = vpop.f32.mrf.mxu0
        %v1095 = vadd.f32 %v1069, %v1094
        %1096 = vmatmul.f32.gmra.mxu0 %v1075
        %v1097 = vpop.f32.mrf.mxu0
        %v1098 = vadd.f32 %v1069, %v1097
        %1099 = vdwg.mxu0
        %v1100 = vmax.f32 %v1095, 0.0
        %v1101 = vmax.f32 %v1098, 0.0
        %v1102 = vld [vmem:[%s12] sm:$0xff]
        %v1103 = vld [vmem:[%s12 + $0x8] sm:$0xff]
        %v1104 = vld [vmem:[%s12 + $0x10] sm:$0xff]
        %v1105 = vld [vmem:[%s12 + $0x18] sm:$0xff]
        %v1106 = vld [vmem:[%s13] sm:$0x1]
        %v1108 = vperm.slane %v1106, 0
        %v1111 = vsel %vm728, %v1100, 0
        %v1114 = vsel %vm728, %v1101, 0
        %1116 = vmatpush.msra.mxu0 0.0
        %1117 = vmatpush.msra.mxu0 0.0
        %1118 = vmatpush.msra.mxu0 0.0
        %1119 = vmatpush.msra.mxu0 0.0
        %1120 = vmatpush.msra.mxu0 0.0
        %1121 = vmatpush.msra.mxu0 0.0
        %1122 = vmatpush.msra.mxu0 0.0
        %1123 = vmatpush.msra.mxu0 0.0
        %1124 = vmatpush.msra.mxu0 0.0
        %1125 = vmatpush.msra.mxu0 0.0
        %1126 = vmatpush.msra.mxu0 0.0
        %1127 = vmatpush.msra.mxu0 0.0
        %1128 = vmatpush.msra.mxu0 %v1105
        %1129 = vmatpush.msra.mxu0 %v1104
        %1130 = vmatpush.msra.mxu0 %v1103
        %1131 = vmatpush.msra.mxu0 %v1102
        %1132 = vmatmul.f32.gmra.mxu0 %v1111
        %v1133 = vpop.f32.mrf.mxu0
        %v1134 = vadd.f32 %v1108, %v1133
        %1135 = vmatmul.f32.gmra.mxu0 %v1114
        %v1136 = vpop.f32.mrf.mxu0
        %v1137 = vadd.f32 %v1108, %v1136
        %1138 = vdwg.mxu0
        %v1139 = vadd.f32 %v689, %v1134
        %v1140 = vadd.f32 %v690, %v1137
        %vm1143 = vcmask 1041408
        %v1144 = vrot.slane %v1139, 6
        %v1145 = vrot.slane %v1140, 6
        %v1146 = vsel %vm1143, %v1144, %v1145
        %v1150 = vsel %vm1143, 0.0, %v1144
        %v1151 = vsel %vm1143, %v1145, 0.0
        %v1154 = vrot.slane %v1150, 2
        %v1155 = vrot.slane %v1146, 2
        %v1156 = vsel %vm716, %v1154, %v1155
        %v1157 = vrot.slane %v1151, 2
        %v1158 = vsel %vm716, %v1155, %v1157
        %1159 = vrot.lane.b32.xlu0 %v1156, 32
        %v1160 = vpop.permute.xlu0 %1159
        %1161 = vrot.lane.b32.xlu0 %v1158, 32
        %v1162 = vpop.permute.xlu0 %1161
        %vm1165 = vcmask 1043456
        %v1166 = vrot.slane %v1150, 4
        %v1167 = vrot.slane %v1146, 4
        %v1168 = vsel %vm1165, %v1166, %v1167
        %v1169 = vrot.slane %v1151, 4
        %v1170 = vsel %vm1165, %v1167, %v1169
        %1171 = vrot.lane.b32.xlu0 %v1168, 64
        %v1172 = vpop.permute.xlu0 %1171
        %1173 = vrot.lane.b32.xlu0 %v1170, 64
        %v1174 = vpop.permute.xlu0 %1173
        %v1177 = vsel %vm728, %v1150, %v1160
        %v1178 = vsel %vm728, %v1146, %v1162
        %v1179 = vsel %vm649, %v1177, %v1172
        %v1180 = vsel %vm649, %v1178, %v1174
        %s1181 = scalar_lea.vmem %s6, 96
        %v1182 = vld [vmem:[%s1181] sm:$0xff]
        %v1183 = vld [vmem:[%s1181 + $0x8] sm:$0xff]
        %v1184 = vld [vmem:[%s1181 + $0x10] sm:$0xff]
        %v1185 = vld [vmem:[%s1181 + $0x18] sm:$0xff]
        %v1186 = vld [vmem:[%s1181 + $0x20] sm:$0xff]
        %v1187 = vld [vmem:[%s1181 + $0x28] sm:$0xff]
        %v1188 = vld [vmem:[%s1181 + $0x30] sm:$0xff]
        %v1189 = vld [vmem:[%s1181 + $0x38] sm:$0xff]
        %v1190 = vld [vmem:[%s1181 + $0x40] sm:$0xff]
        %v1191 = vld [vmem:[%s1181 + $0x48] sm:$0xff]
        %v1192 = vld [vmem:[%s1181 + $0x50] sm:$0xff]
        %v1193 = vld [vmem:[%s1181 + $0x58] sm:$0xff]
        %s1194 = scalar_lea.vmem %s7, 1
        %v1195 = vld [vmem:[%s1194] sm:$0x1]
        %v1197 = vperm.slane %v1195, 0
        %v1200 = vsel %vm749, %v1179, 0
        %v1203 = vsel %vm749, %v1180, 0
        %1205 = vmatpush.msra.mxu0 0.0
        %1206 = vmatpush.msra.mxu0 0.0
        %1207 = vmatpush.msra.mxu0 0.0
        %1208 = vmatpush.msra.mxu0 0.0
        %1209 = vmatpush.msra.mxu0 %v1193
        %1210 = vmatpush.msra.mxu0 %v1192
        %1211 = vmatpush.msra.mxu0 %v1191
        %1212 = vmatpush.msra.mxu0 %v1190
        %1213 = vmatpush.msra.mxu0 %v1189
        %1214 = vmatpush.msra.mxu0 %v1188
        %1215 = vmatpush.msra.mxu0 %v1187
        %1216 = vmatpush.msra.mxu0 %v1186
        %1217 = vmatpush.msra.mxu0 %v1185
        %1218 = vmatpush.msra.mxu0 %v1184
        %1219 = vmatpush.msra.mxu0 %v1183
        %1220 = vmatpush.msra.mxu0 %v1182
        %1221 = vmatmul.f32.gmra.mxu0 %v1200
        %v1222 = vpop.f32.mrf.mxu0
        %v1223 = vadd.f32 %v1197, %v1222
        %1224 = vmatmul.f32.gmra.mxu0 %v1203
        %v1225 = vpop.f32.mrf.mxu0
        %v1226 = vadd.f32 %v1197, %v1225
        %1227 = vdwg.mxu0
        %s1228 = scalar_lea.vmem %s8, 32
        %v1229 = vld [vmem:[%s1228] sm:$0xff]
        %v1230 = vld [vmem:[%s1228 + $0x8] sm:$0xff]
        %v1231 = vld [vmem:[%s1228 + $0x10] sm:$0xff]
        %v1232 = vld [vmem:[%s1228 + $0x18] sm:$0xff]
        %s1233 = scalar_lea.vmem %s9, 1
        %v1234 = vld [vmem:[%s1233] sm:$0x1]
        %v1236 = vperm.slane %v1234, 0
        %v1238 = vsel %vm728, %v1139, 0
        %v1240 = vsel %vm728, %v1140, 0
        %1242 = vmatpush.msra.mxu0 0.0
        %1243 = vmatpush.msra.mxu0 0.0
        %1244 = vmatpush.msra.mxu0 0.0
        %1245 = vmatpush.msra.mxu0 0.0
        %1246 = vmatpush.msra.mxu0 0.0
        %1247 = vmatpush.msra.mxu0 0.0
        %1248 = vmatpush.msra.mxu0 0.0
        %1249 = vmatpush.msra.mxu0 0.0
        %1250 = vmatpush.msra.mxu0 0.0
        %1251 = vmatpush.msra.mxu0 0.0
        %1252 = vmatpush.msra.mxu0 0.0
        %1253 = vmatpush.msra.mxu0 0.0
        %1254 = vmatpush.msra.mxu0 %v1232
        %1255 = vmatpush.msra.mxu0 %v1231
        %1256 = vmatpush.msra.mxu0 %v1230
        %1257 = vmatpush.msra.mxu0 %v1229
        %1258 = vmatmul.f32.gmra.mxu0 %v1238
        %v1259 = vpop.f32.mrf.mxu0
        %v1260 = vadd.f32 %v1236, %v1259
        %1261 = vmatmul.f32.gmra.mxu0 %v1240
        %v1262 = vpop.f32.mrf.mxu0
        %v1263 = vadd.f32 %v1236, %v1262
        %1264 = vdwg.mxu0
        %v1267 = vrot.slane %v1260, 6
        %v1268 = vrot.slane %v1263, 6
        %v1269 = vsel %vm1143, %v1267, %v1268
        %1270 = vrot.lane.b32.xlu0 %v1267, 96
        %v1271 = vpop.permute.xlu0 %1270
        %1272 = vrot.lane.b32.xlu0 %v1269, 96
        %v1273 = vpop.permute.xlu0 %1272
        %1274 = vrot.lane.b32.xlu0 %v1268, 96
        %v1275 = vpop.permute.xlu0 %1274
        %v1279 = vsel %vm1143, 0.0, %v1271
        %v1280 = vsel %vm1143, %v1275, 0.0
        %1281 = vrot.lane.b32.xlu0 %v1267, 64
        %v1282 = vpop.permute.xlu0 %1281
        %1283 = vrot.lane.b32.xlu0 %v1269, 64
        %v1284 = vpop.permute.xlu0 %1283
        %1285 = vrot.lane.b32.xlu0 %v1268, 64
        %v1286 = vpop.permute.xlu0 %1285
        %v1290 = vsel %vm1143, 0.0, %v1282
        %v1291 = vsel %vm1143, %v1286, 0.0
        %v1292 = vmul.f32 %v1260, %v1279
        %v1293 = vmul.f32 %v1263, %v1273
        %v1294 = vsel %vm728, %v1292, 0.0
        %1295 = vadd.xlane.f32.xlu0 %v1294
        %v1296 = vpop.xlane.xlu0 %1295
        %v1297 = vsel %vm728, %v1293, 0.0
        %1298 = vadd.xlane.f32.xlu0 %v1297
        %v1299 = vpop.xlane.xlu0 %1298
        %v1302 = vrot.slane %v1279, 2
        %v1303 = vrot.slane %v1273, 2
        %v1304 = vsel %vm716, %v1302, %v1303
        %v1305 = vrot.slane %v1280, 2
        %v1306 = vsel %vm716, %v1303, %v1305
        %v1309 = vmul.f32 %v1260, %v1304
        %v1310 = vmul.f32 %v1263, %v1306
        %v1311 = vsel %vm728, %v1309, 0.0
        %1312 = vadd.xlane.f32.xlu0 %v1311
        %v1313 = vpop.xlane.xlu0 %1312
        %v1314 = vsel %vm728, %v1310, 0.0
        %1315 = vadd.xlane.f32.xlu0 %v1314
        %v1316 = vpop.xlane.xlu0 %1315
        %v1317 = vrot.slane %v1279, 4
        %v1318 = vrot.slane %v1273, 4
        %v1319 = vsel %vm1165, %v1317, %v1318
        %v1320 = vrot.slane %v1280, 4
        %v1321 = vsel %vm1165, %v1318, %v1320
        %v1324 = vmul.f32 %v1260, %v1319
        %v1325 = vmul.f32 %v1263, %v1321
        %v1326 = vsel %vm728, %v1324, 0.0
        %1327 = vadd.xlane.f32.xlu0 %v1326
        %v1328 = vpop.xlane.xlu0 %1327
        %v1329 = vsel %vm728, %v1325, 0.0
        %1330 = vadd.xlane.f32.xlu0 %v1329
        %v1331 = vpop.xlane.xlu0 %1330
        %v1332 = vsel %vm881, %v1296, %v1313
        %v1333 = vsel %vm881, %v1299, %v1316
        %v1334 = vsel %vm884, %v1332, %v1328
        %v1335 = vsel %vm884, %v1333, %v1331
        %v1336 = vmul.f32 %v1334, 0.17677669
        %v1337 = vmul.f32 %v1335, 0.17677669
        %v1338 = vmul.u32 %v893, 2
        %v1339 = vadd.s32 %v890, %v1338
        %v1340 = vadd.s32 %v891, %v1338
        %vm1341 = vcmp.ge.s32.totalorder %v1339, 2
        %vm1342 = vcmp.ge.s32.totalorder %v1340, 2
        %vm1343 = vcmp.lt.s32.totalorder %v1339, 18
        %vm1344 = vcmp.lt.s32.totalorder %v1340, 18
        %vm1345 = vmand %vm1341, %vm1343
        %vm1346 = vmand %vm1342, %vm1344
        %v1347 = vsel %vm1345, 9.999995e-07, -13.815511
        %v1348 = vsel %vm1346, 9.999995e-07, -13.815511
        %v1349 = vadd.f32 %v1336, %v1347
        %v1350 = vadd.f32 %v1337, %v1348
        %v1351 = vsel %vm906, %v1349, -inf
        %1352 = vmax.xlane.f32.xlu0 %v1351
        %v1353 = vpop.xlane.xlu0 %1352
        %v1354 = vsel %vm906, %v1350, -inf
        %1355 = vmax.xlane.f32.xlu0 %v1354
        %v1356 = vpop.xlane.xlu0 %1355
        %v1357 = vsub.f32 %v1349, %v1353
        %v1358 = vsub.f32 %v1350, %v1356
        %v1359 = vmul.f32 %v1357, 1.442695
        %v1360 = vpow.pop %v1359
        %v1361 = vmul.f32 %v1358, 1.442695
        %v1362 = vpow.pop %v1361
        %v1363 = vsel %vm906, %v1360, 0.0
        %1364 = vadd.xlane.f32.xlu0 %v1363
        %v1365 = vpop.xlane.xlu0 %1364
        %v1366 = vsel %vm906, %v1362, 0.0
        %1367 = vadd.xlane.f32.xlu0 %v1366
        %v1368 = vpop.xlane.xlu0 %1367
        %v1369 = vrcp.pop %v1365
        %v1370 = vmul.f32 %v1365, %v1369
        %v1371 = vsub.f32 1.0, %v1370
        %v1372 = vmul.f32 %v1369, %v1371
        %v1373 = vadd.f32 %v1369, %v1372
        %vm1374 = vweird.f32 %v1365
        %vm1375 = vweird.f32 %v1369
        %vm1376 = vmor %vm1374, %vm1375
        %v1377 = vsel %vm1376, %v1369, %v1373
        %v1378 = vand.u32 2147483647, %v1365
        %vm1379 = vcmp.eq.f32.partialorder %v1378, 8.507059e+37
        %v1380 = vand.u32 %v1365, 2147483648
        %v1381 = vor.u32 1.1754944e-38, %v1380
        %v1382 = vsel %vm1379, %v1381, %v1377
        %v1383 = vmul.f32 %v1360, %v1382
        %v1384 = vrcp.pop %v1368
        %v1385 = vmul.f32 %v1368, %v1384
        %v1386 = vsub.f32 1.0, %v1385
        %v1387 = vmul.f32 %v1384, %v1386
        %v1388 = vadd.f32 %v1384, %v1387
        %vm1389 = vweird.f32 %v1368
        %vm1390 = vweird.f32 %v1384
        %vm1391 = vmor %vm1389, %vm1390
        %v1392 = vsel %vm1391, %v1384, %v1388
        %v1393 = vand.u32 2147483647, %v1368
        %vm1394 = vcmp.eq.f32.partialorder %v1393, 8.507059e+37
        %v1395 = vand.u32 %v1368, 2147483648
        %v1396 = vor.u32 1.1754944e-38, %v1395
        %v1397 = vsel %vm1394, %v1396, %v1392
        %v1398 = vmul.f32 %v1362, %v1397
        %v1399 = vsel %vm1345, 1, 0
        %v1400 = vsel %vm1346, 1, 0
        %v1401 = vcvt.s32.f32 %v1399
        %v1402 = vcvt.s32.f32 %v1400
        %v1403 = vmul.f32 %v1383, %v1401
        %v1404 = vmul.f32 %v1398, %v1402
        %1406 = vset.pattern.permute.xlu0 0
        %1407 = vperm.xlu0 %1406, %v1403
        %v1408 = vpop.permute.xlu0 %1407
        %1411 = vset.pattern.permute.xlu0 0
        %1412 = vperm.xlu0 %1411, %v1404
        %v1413 = vpop.permute.xlu0 %1412
        %v1415 = vmul.f32 %v1408, %v1290
        %v1416 = vmul.f32 %v1413, %v1284
        %v1417 = vadd.f32 %v1415, 0.0
        %v1418 = vadd.f32 %v1416, 0.0
        %1419 = vset.pattern.permute.xlu0 1
        %1420 = vperm.xlu0 %1419, %v1403
        %v1421 = vpop.permute.xlu0 %1420
        %1423 = vset.pattern.permute.xlu0 1
        %1424 = vperm.xlu0 %1423, %v1404
        %v1425 = vpop.permute.xlu0 %1424
        %v1429 = vrot.slane %v1290, 2
        %v1430 = vrot.slane %v1284, 2
        %v1431 = vsel %vm716, %v1429, %v1430
        %v1432 = vrot.slane %v1291, 2
        %v1433 = vsel %vm716, %v1430, %v1432
        %v1436 = vmul.f32 %v1421, %v1431
        %v1437 = vmul.f32 %v1425, %v1433
        %v1438 = vadd.f32 %v1417, %v1436
        %v1439 = vadd.f32 %v1418, %v1437
        %1440 = vset.pattern.permute.xlu0 2
        %1441 = vperm.xlu0 %1440, %v1403
        %v1442 = vpop.permute.xlu0 %1441
        %1444 = vset.pattern.permute.xlu0 2
        %1445 = vperm.xlu0 %1444, %v1404
        %v1446 = vpop.permute.xlu0 %1445
        %v1448 = vrot.slane %v1290, 4
        %v1449 = vrot.slane %v1284, 4
        %v1450 = vsel %vm1165, %v1448, %v1449
        %v1451 = vrot.slane %v1291, 4
        %v1452 = vsel %vm1165, %v1449, %v1451
        %v1455 = vmul.f32 %v1442, %v1450
        %v1456 = vmul.f32 %v1446, %v1452
        %v1457 = vadd.f32 %v1438, %v1455
        %v1458 = vadd.f32 %v1439, %v1456
        %v1459 = vadd.f32 %v1223, %v1457
        %v1460 = vadd.f32 %v1226, %v1458
        %v1461 = vsel %vm728, %v1459, 0.0
        %v1462 = vsel %vm728, %v1460, 0.0
        %v1463 = vadd.f32 %v1461, %v1462
        %v1464 = vrot.slane %v1463, 4
        %v1465 = vadd.f32 %v1463, %v1464
        %v1466 = vrot.slane %v1465, 2
        %v1467 = vadd.f32 %v1465, %v1466
        %v1468 = vrot.slane %v1467, 1
        %v1469 = vadd.f32 %v1467, %v1468
        %v1470 = vmul.f32 %v1469, %v1032
        %v1471 = vmul.f32 %v1459, %v1459
        %v1472 = vmul.f32 %v1460, %v1460
        %v1473 = vsel %vm728, %v1471, 0.0
        %v1474 = vsel %vm728, %v1472, 0.0
        %v1475 = vadd.f32 %v1473, %v1474
        %v1476 = vrot.slane %v1475, 4
        %v1477 = vadd.f32 %v1475, %v1476
        %v1478 = vrot.slane %v1477, 2
        %v1479 = vadd.f32 %v1477, %v1478
        %v1480 = vrot.slane %v1479, 1
        %v1481 = vadd.f32 %v1479, %v1480
        %v1482 = vmul.f32 %v1481, %v1032
        %v1483 = vmul.f32 %v1470, %v1470
        %v1484 = vsub.f32 %v1482, %v1483
        %v1485 = vsub.f32 %v1459, %v1470
        %v1486 = vsub.f32 %v1460, %v1470
        %v1487 = vadd.f32 %v1484, 1e-05
        %v1488 = vrsqrt.pop %v1487
        %v1489 = vmul.f32 %v1488, %v1487
        %v1490 = vmul.f32 %v1489, %v1488
        %v1491 = vmul.f32 0.5, %v1490
        %v1492 = vsub.f32 1.5, %v1491
        %v1493 = vmul.f32 %v1488, %v1492
        %vm1494 = vweird.f32 %v1487
        %vm1495 = vweird.f32 %v1488
        %vm1496 = vmor %vm1494, %vm1495
        %v1497 = vsel %vm1496, %v1488, %v1493
        %v1498 = vmul.f32 %v1485, %v1497
        %v1499 = vmul.f32 %v1486, %v1497
        %s1500 = scalar_lea.vmem %s10, 32
        %v1501 = vld [vmem:[%s1500] sm:$0xff]
        %v1502 = vld [vmem:[%s1500 + $0x8] sm:$0xff]
        %v1503 = vld [vmem:[%s1500 + $0x10] sm:$0xff]
        %v1504 = vld [vmem:[%s1500 + $0x18] sm:$0xff]
        %s1505 = scalar_lea.vmem %s11, 1
        %v1506 = vld [vmem:[%s1505] sm:$0x1]
        %v1508 = vperm.slane %v1506, 0
        %v1511 = vsel %vm728, %v1498, 0
        %v1514 = vsel %vm728, %v1499, 0
        %1516 = vmatpush.msra.mxu0 0.0
        %1517 = vmatpush.msra.mxu0 0.0
        %1518 = vmatpush.msra.mxu0 0.0
        %1519 = vmatpush.msra.mxu0 0.0
        %1520 = vmatpush.msra.mxu0 0.0
        %1521 = vmatpush.msra.mxu0 0.0
        %1522 = vmatpush.msra.mxu0 0.0
        %1523 = vmatpush.msra.mxu0 0.0
        %1524 = vmatpush.msra.mxu0 0.0
        %1525 = vmatpush.msra.mxu0 0.0
        %1526 = vmatpush.msra.mxu0 0.0
        %1527 = vmatpush.msra.mxu0 0.0
        %1528 = vmatpush.msra.mxu0 %v1504
        %1529 = vmatpush.msra.mxu0 %v1503
        %1530 = vmatpush.msra.mxu0 %v1502
        %1531 = vmatpush.msra.mxu0 %v1501
        %1532 = vmatmul.f32.gmra.mxu0 %v1511
        %v1533 = vpop.f32.mrf.mxu0
        %v1534 = vadd.f32 %v1508, %v1533
        %1535 = vmatmul.f32.gmra.mxu0 %v1514
        %v1536 = vpop.f32.mrf.mxu0
        %v1537 = vadd.f32 %v1508, %v1536
        %1538 = vdwg.mxu0
        %v1539 = vmax.f32 %v1534, 0.0
        %v1540 = vmax.f32 %v1537, 0.0
        %s1541 = scalar_lea.vmem %s12, 32
        %v1542 = vld [vmem:[%s1541] sm:$0xff]
        %v1543 = vld [vmem:[%s1541 + $0x8] sm:$0xff]
        %v1544 = vld [vmem:[%s1541 + $0x10] sm:$0xff]
        %v1545 = vld [vmem:[%s1541 + $0x18] sm:$0xff]
        %s1546 = scalar_lea.vmem %s13, 1
        %v1547 = vld [vmem:[%s1546] sm:$0x1]
        %v1549 = vperm.slane %v1547, 0
        %v1552 = vsel %vm728, %v1539, 0
        %v1555 = vsel %vm728, %v1540, 0
        %1557 = vmatpush.msra.mxu0 0.0
        %1558 = vmatpush.msra.mxu0 0.0
        %1559 = vmatpush.msra.mxu0 0.0
        %1560 = vmatpush.msra.mxu0 0.0
        %1561 = vmatpush.msra.mxu0 0.0
        %1562 = vmatpush.msra.mxu0 0.0
        %1563 = vmatpush.msra.mxu0 0.0
        %1564 = vmatpush.msra.mxu0 0.0
        %1565 = vmatpush.msra.mxu0 0.0
        %1566 = vmatpush.msra.mxu0 0.0
        %1567 = vmatpush.msra.mxu0 0.0
        %1568 = vmatpush.msra.mxu0 0.0
        %1569 = vmatpush.msra.mxu0 %v1545
        %1570 = vmatpush.msra.mxu0 %v1544
        %1571 = vmatpush.msra.mxu0 %v1543
        %1572 = vmatpush.msra.mxu0 %v1542
        %1573 = vmatmul.f32.gmra.mxu0 %v1552
        %v1574 = vpop.f32.mrf.mxu0
        %v1575 = vadd.f32 %v1549, %v1574
        %1576 = vmatmul.f32.gmra.mxu0 %v1555
        %v1577 = vpop.f32.mrf.mxu0
        %v1578 = vadd.f32 %v1549, %v1577
        %1579 = vdwg.mxu0
        %v1580 = vadd.f32 %v1139, %v1575
        %v1581 = vadd.f32 %v1140, %v1578
        %v1582 = vld [vmem:[%s14] sm:$0xff]
        %v1583 = vld [vmem:[%s14 + $0x8] sm:$0xff]
        %v1584 = vld [vmem:[%s14 + $0x10] sm:$0xff]
        %v1585 = vld [vmem:[%s14 + $0x18] sm:$0xff]
        %v1586 = vld [vmem:[%s15] sm:$0x1]
        %v1588 = vperm.slane %v1586, 0
        %v1591 = vsel %vm728, %v1580, 0
        %v1594 = vsel %vm728, %v1581, 0
        %1596 = vmatpush.msra.mxu0 0.0
        %1597 = vmatpush.msra.mxu0 0.0
        %1598 = vmatpush.msra.mxu0 0.0
        %1599 = vmatpush.msra.mxu0 0.0
        %1600 = vmatpush.msra.mxu0 0.0
        %1601 = vmatpush.msra.mxu0 0.0
        %1602 = vmatpush.msra.mxu0 0.0
        %1603 = vmatpush.msra.mxu0 0.0
        %1604 = vmatpush.msra.mxu0 0.0
        %1605 = vmatpush.msra.mxu0 0.0
        %1606 = vmatpush.msra.mxu0 0.0
        %1607 = vmatpush.msra.mxu0 0.0
        %1608 = vmatpush.msra.mxu0 %v1585
        %1609 = vmatpush.msra.mxu0 %v1584
        %1610 = vmatpush.msra.mxu0 %v1583
        %1611 = vmatpush.msra.mxu0 %v1582
        %1612 = vmatmul.f32.gmra.mxu0 %v1591
        %v1613 = vpop.f32.mrf.mxu0
        %v1614 = vadd.f32 %v1588, %v1613
        %1615 = vmatmul.f32.gmra.mxu0 %v1594
        %v1616 = vpop.f32.mrf.mxu0
        %v1617 = vadd.f32 %v1588, %v1616
        %1618 = vdwg.mxu0
        %1619 = vxpose.xlu0.b32.start [1/16] %v1614, 128
        %1620 = vxpose.xlu0.b32.cont [2/16] %v1617, 128
        %1621 = vxpose.xlu0.b32.cont [3/16] 0.0, 128
        %1622 = vxpose.xlu0.b32.cont [4/16] 0.0, 128
        %1623 = vxpose.xlu0.b32.cont [5/16] 0.0, 128
        %1624 = vxpose.xlu0.b32.cont [6/16] 0.0, 128
        %1625 = vxpose.xlu0.b32.cont [7/16] 0.0, 128
        %1626 = vxpose.xlu0.b32.cont [8/16] 0.0, 128
        %1627 = vxpose.xlu0.b32.cont [9/16] 0.0, 128
        %1628 = vxpose.xlu0.b32.cont [10/16] 0.0, 128
        %1629 = vxpose.xlu0.b32.cont [11/16] 0.0, 128
        %1630 = vxpose.xlu0.b32.cont [12/16] 0.0, 128
        %1631 = vxpose.xlu0.b32.cont [13/16] 0.0, 128
        %1632 = vxpose.xlu0.b32.cont [14/16] 0.0, 128
        %1633 = vxpose.xlu0.b32.cont [15/16] 0.0, 128
        %1634 = vxpose.xlu0.b32.end [16/16] 0.0, 128
        %v1635 = vpop.trf.xlu0
        %v1636 = vpop.trf.xlu0
        %v1637 = vpop.trf.xlu0
        %v1638 = vpop.trf.xlu0
        %v1639 = vpop.trf.xlu0
        %v1640 = vpop.trf.xlu0
        %v1641 = vpop.trf.xlu0
        %v1642 = vpop.trf.xlu0
        %v1643 = vpop.trf.xlu0
        %v1644 = vpop.trf.xlu0
        %v1645 = vpop.trf.xlu0
        %v1646 = vpop.trf.xlu0
        %v1647 = vpop.trf.xlu0
        %v1648 = vpop.trf.xlu0
        %v1649 = vpop.trf.xlu0
        %v1650 = vpop.trf.xlu0
        %vm1651 = vcmask 130048
        %1652 = vst.msk [vmem:[%s527] sm:$0xff] %vm1651, %v1635
        %s1653 = sand.u32 %s384, 1
        %s1654 = scalar_lea.sflag [#allocation3], %s1653
        %s1655 = sand.u32 %s384, 1
        %s1656 = smul.addr %s1655, 8
        %s1657 = scalar_lea.vmem [#allocation2], %s1656
        // Predicated region
        $region85: #{tpu_custom_call.1} parent=83 // pred_check
          %p1658 = pneg %p394
        $region86: #{tpu_custom_call.1} parent=83 // pred_check_branch
          %1660 = sbr.rel (%p1658) target = $region88
        $region87: #{tpu_custom_call.1} parent=83 // pred_region
          %1662 = vsyncadd %s1654, 0
          %s1663 = smul.addr %s30, 8
          %s1664 = scalar_lea.hbm %s16, %s1663
          %s1666 = sshll.u32 %s1657, 4
          %s1667 = int_to_ptr.vmem [resolvable:$true] %s1666
          %s1668 = sshll.u32 %s1664, 4
          %s1669 = int_to_ptr.hbm [resolvable:$true] %s1668
          %1671 = dma.vmem_to_hbm [thread:$0]  %s1667, 128, %s1669, %s1654
        $region88: #{tpu_custom_call.1} parent=83 // pred_fallthru
          _
      $region84: #{tpu_custom_call.1} parent=5 // pred_fallthru
        _
      %p1672 = scmp.le.s32.totalorder 2, %s25
      // Predicated region
      $region89: #{tpu_custom_call.1} parent=5 // pred_check
        %p1673 = pneg %p1672
      $region90: #{tpu_custom_call.1} parent=5 // pred_check_branch
        %1675 = sbr.rel (%p1673) target = $region92
      $region91: #{tpu_custom_call.1} parent=5 // pred_region
        %s1676 = ssub.s32 %s25, 2
        // Predicated region
        $region93: #{tpu_custom_call.1} parent=91 // pred_check
          %p1677 = pneg %p400
        $region94: #{tpu_custom_call.1} parent=91 // pred_check_branch
          %1679 = sbr.rel (%p1677) target = $region96
        $region95: #{tpu_custom_call.1} parent=91 // pred_region
          %s1680 = sand.u32 %s385, 1
          %s1681 = scalar_lea.sflag [#allocation3], %s1680
          %s1682 = sand.u32 %s385, 1
          %s1683 = smul.addr %s1682, 8
          %s1684 = scalar_lea.vmem [#allocation2], %s1683
          %1686 = dma.done %s1681, 128
        $region96: #{tpu_custom_call.1} parent=91 // pred_fallthru
          _
      $region92: #{tpu_custom_call.1} parent=5 // pred_fallthru
        _
    $region6: #{tpu_custom_call.1} parent=1 // loop_footer
      %s29 = sadd.s32 1, %s25
    $region7: #{tpu_custom_call.1} parent=1 // loop_footer_branch
      %24 = sbr.rel target = $region3
    $region8: #{tpu_custom_call.1} parent=1 // loop_exit
      _
    %1687 = vsyncpa [#allocation3], 1
    %s1688 = scalar_lea.sflag [#allocation3], 1
    %1689 = vsyncpa %s1688, 1

</llo_original>
